<compile_context>
chip_gen: v6e
topology: v6e:2x2x1
jax: 0.10.0
libtpu: 0.0.40
codegen_flags: <defaults>
</compile_context>

<pallas_src>
import jax
import jax.numpy as jnp
from jax import lax
from jax.experimental import pallas as pl
from jax.experimental.pallas import tpu as pltpu

HEADS = 4
DIM_HEAD = 32
HIDDEN = HEADS * DIM_HEAD          # 128 -> exactly one MXU / vreg lane width
SCALE = DIM_HEAD ** -0.5
LN_EPS = 1e-5                      # float32 path of the torch LayerNorm


def linear_attention_kernel(x_ref, wqkv_ref, wout_ref, bout_ref, g_ref,
                            mask_ref, o_ref):
    # x_ref:    (1, C, N)         one batch element; channels on sublanes, pixels on lanes
    # wqkv_ref: (3*HIDDEN, C)     to_qkv 1x1 conv weight (native torch layout)
    # wout_ref: (C, HIDDEN)       to_out 1x1 conv weight, pre-scaled by scale/(h*w)
    # bout_ref: (C, 1)            to_out bias
    # g_ref:    (C, 1)            LayerNorm gain
    # mask_ref: (HIDDEN, HIDDEN)  0/1 block-diagonal head mask
    # o_ref:    (1, C, N)         output, same layout as x
    x = x_ref[0].astype(jnp.bfloat16)                                   # (C, N)

    # to_qkv 1x1 conv == channel matmul.  bf16 operands, f32 accumulation.
    qkv = jnp.dot(wqkv_ref[...].astype(jnp.bfloat16), x,
                  preferred_element_type=jnp.float32)                   # (3H, N)

    q_all = qkv[:HIDDEN]                                                # (HIDDEN, N)
    k_all = qkv[HIDDEN:2 * HIDDEN]                                      # (HIDDEN, N)
    v_all = qkv[2 * HIDDEN:]                                            # (HIDDEN, N)

    mask01 = mask_ref[...]                                              # (H, H)

    # q: softmax over the head-feature axis (groups of DIM_HEAD sublanes).
    # Subtracting the global per-pixel max (all 128 channels) is mathematically
    # identical to a per-head max (the shift cancels inside each head's own
    # normalization) and keeps every tensor 2-D.  The per-head sums come from a
    # single 128x128 MXU matmul with the block-diagonal mask: row d of q_sums is
    # the exp-sum of head(d), so normalization is one full-width multiply.
    q_max = jnp.max(q_all, axis=0, keepdims=True)                       # (1, N)
    qe = jnp.exp(q_all - q_max)                                         # (HIDDEN, N)
    q_sums = jnp.dot(mask01.astype(jnp.bfloat16), qe.astype(jnp.bfloat16),
                     preferred_element_type=jnp.float32)                # (HIDDEN, N)
    q = qe * pl.reciprocal(q_sums, approx=True)                         # softmax(dim=-2)

    # k: softmax over the pixel (lane) axis -- full width.
    ke = jnp.exp(k_all - jnp.max(k_all, axis=1, keepdims=True))
    k = ke * pl.reciprocal(jnp.sum(ke, axis=1, keepdims=True), approx=True)

    # context^T[e, d] = sum_n v[e, n] * k[d, n]: one 128x128 MXU matmul covers
    # all heads; the block-diagonal mask zeroes cross-head blocks.  (q's scale
    # and v's 1/(h*w) were folded into wout by the wrapper.)
    ctx = lax.dot_general(v_all.astype(jnp.bfloat16), k.astype(jnp.bfloat16),
                          (((1,), (1,)), ((), ())),
                          preferred_element_type=jnp.float32)           # (HIDDEN, HIDDEN)
    ctx = ctx * mask01

    # out[e, n] = sum_d context^T[e, d] * q[d, n]
    out = jnp.dot(ctx.astype(jnp.bfloat16), q.astype(jnp.bfloat16),
                  preferred_element_type=jnp.float32)                   # (HIDDEN, N)

    # to_out 1x1 conv (+bias) then channel LayerNorm (biased var, learnable gain).
    proj = jnp.dot(wout_ref[...].astype(jnp.bfloat16), out.astype(jnp.bfloat16),
                   preferred_element_type=jnp.float32)                  # (C, N)
    proj = proj + bout_ref[...]
    mean = jnp.mean(proj, axis=0, keepdims=True)                        # (1, N)
    var = jnp.mean((proj - mean) ** 2, axis=0, keepdims=True)
    normed = (proj - mean) * lax.rsqrt(var + LN_EPS) * g_ref[...]

    o_ref[0] = normed.astype(o_ref.dtype)


def linear_attention(x_nchw, wqkv, wout, bout, g):
    """x_nchw: (b, c, h, w) float32.  Returns (b, c, h, w)."""
    b, c, h, w = x_nchw.shape
    n = h * w
    x = x_nchw.reshape(b, c, n)            # NCHW is already channel-major over h*w

    bout2 = bout.reshape(c, 1)
    g2 = g.reshape(c, 1)

    # q's softmax scale and v's 1/(h*w) are linear factors downstream of the
    # attention matmuls -> fold them into the tiny output-projection weight.
    wout_scaled = wout * (SCALE / n)

    # 0/1 block-diagonal head mask (used for per-head exp-sums and the context).
    head_ids = jnp.arange(HIDDEN, dtype=jnp.int32) // DIM_HEAD
    mask01 = (head_ids[:, None] == head_ids[None, :]).astype(jnp.float32)

    # TODO(synk): for very large h*w (or v7x's 64 MiB VMEM), add an N-tile grid axis
    # with a separate global-N pass for the k-softmax sums and the context matrix;
    # constant-index weight specs could then also use pipeline_mode=pl.Buffered(1).
    out = pl.pallas_call(
        linear_attention_kernel,
        out_shape=jax.ShapeDtypeStruct((b, c, n), x.dtype),
        grid_spec=pltpu.PrefetchScalarGridSpec(
            num_scalar_prefetch=0,
            grid=(b,),
            in_specs=[
                pl.BlockSpec((1, c, n), lambda i: (i, 0, 0)),
                pl.BlockSpec((3 * HIDDEN, c), lambda i: (0, 0)),
                pl.BlockSpec((c, HIDDEN), lambda i: (0, 0)),
                pl.BlockSpec((c, 1), lambda i: (0, 0)),
                pl.BlockSpec((c, 1), lambda i: (0, 0)),
                pl.BlockSpec((HIDDEN, HIDDEN), lambda i: (0, 0)),
            ],
            out_specs=pl.BlockSpec((1, c, n), lambda i: (i, 0, 0)),
        ),
        compiler_params=pltpu.CompilerParams(dimension_semantics=("parallel",)),
    )(x, wqkv, wout_scaled, bout2, g2, mask01)

    return out.reshape(b, c, h, w)


def reference_forward(x_nchw, wqkv, wout, bout, g):
    """Pure-JAX replica of the PyTorch forward (mirrors the kernel's bf16 matmul
    operands / f32 accumulation so the comparison tolerance stays tight)."""
    b, c, hh, ww = x_nchw.shape
    n = hh * ww
    x = x_nchw.reshape(b, c, n)
    qkv = jnp.einsum('oc,bcn->bon', wqkv.astype(jnp.bfloat16),
                     x.astype(jnp.bfloat16), preferred_element_type=jnp.float32)
    q, k, v = qkv[:, :HIDDEN], qkv[:, HIDDEN:2 * HIDDEN], qkv[:, 2 * HIDDEN:]
    split = lambda t: t.reshape(b, HEADS, DIM_HEAD, n)
    q, k, v = map(split, (q, k, v))
    q = jax.nn.softmax(q, axis=-2) * SCALE
    k = jax.nn.softmax(k, axis=-1)
    v = v / n
    context = jnp.einsum('bhdn,bhen->bhde', k.astype(jnp.bfloat16),
                         v.astype(jnp.bfloat16), preferred_element_type=jnp.float32)
    out = jnp.einsum('bhde,bhdn->bhen', context.astype(jnp.bfloat16),
                     q.astype(jnp.bfloat16), preferred_element_type=jnp.float32)
    out = out.reshape(b, HIDDEN, n)
    proj = jnp.einsum('ch,bhn->bcn', wout.astype(jnp.bfloat16),
                      out.astype(jnp.bfloat16),
                      preferred_element_type=jnp.float32) + bout.reshape(1, c, 1)
    mean = proj.mean(axis=1, keepdims=True)
    var = ((proj - mean) ** 2).mean(axis=1, keepdims=True)
    normed = (proj - mean) * lax.rsqrt(var + LN_EPS) * g.reshape(1, c, 1)
    return normed.reshape(b, c, hh, ww)


if __name__ == "__main__":
    key = jax.random.PRNGKey(0)
    k_x, k_qkv, k_out, k_b = jax.random.split(key, 4)

    B, DIM, H, W = 2, 4, 16, 16
    x = jax.random.normal(k_x, (B, DIM, H, W), dtype=jnp.float32)

    # Parameters in the torch module's native 2D layouts:
    #   to_qkv.weight    (3*hidden, dim, 1, 1) -> (3*hidden, dim)
    #   to_out[0].weight (dim, hidden, 1, 1)   -> (dim, hidden); bias (dim,)
    #   LayerNorm.g      (1, dim, 1, 1)        -> (dim,)  (ones at init)
    wqkv = 0.05 * jax.random.normal(k_qkv, (3 * HIDDEN, DIM), dtype=jnp.float32)
    wout = 0.05 * jax.random.normal(k_out, (DIM, HIDDEN), dtype=jnp.float32)
    bout = 0.1 * jax.random.normal(k_b, (DIM,), dtype=jnp.float32)
    g = jnp.ones((DIM,), dtype=jnp.float32)

    y = jax.block_until_ready(linear_attention(x, wqkv, wout, bout, g))
    y_ref = reference_forward(x, wqkv, wout, bout, g)

    assert y.shape == (B, DIM, H, W)
    assert jnp.allclose(y, y_ref, atol=2e-2, rtol=2e-2), "mismatch vs JAX reference"

    print("KERNEL_OK")
</pallas_src>

<mosaic_0001>
module attributes {stable_mosaic.version = 11 : i64} {
  func.func @linear_attention_kernel(%arg0: i32, %arg1: memref<1x4x256xf32, #tpu.memory_space<vmem>>, %arg2: memref<384x4xf32, #tpu.memory_space<vmem>>, %arg3: memref<4x128xf32, #tpu.memory_space<vmem>>, %arg4: memref<4x1xf32, #tpu.memory_space<vmem>>, %arg5: memref<4x1xf32, #tpu.memory_space<vmem>>, %arg6: memref<128x128xf32, #tpu.memory_space<vmem>>, %arg7: memref<1x4x256xf32, #tpu.memory_space<vmem>>) attributes {dimension_semantics = [#tpu.dimension_semantics<parallel>], iteration_bounds = array<i64: 2>, scalar_prefetch = 0 : i64, scratch_operands = 0 : i64, tpu.core_type = #tpu.core_type<tc>, window_params = [{transform_indices = @transform_0, window_bounds = array<i64: 1, 4, 256>}, {pipeline_mode = #tpu.pipeline_mode<synchronous>, transform_indices = @transform_1, window_bounds = array<i64: 384, 4>}, {pipeline_mode = #tpu.pipeline_mode<synchronous>, transform_indices = @transform_2, window_bounds = array<i64: 4, 128>}, {pipeline_mode = #tpu.pipeline_mode<synchronous>, transform_indices = @transform_3, window_bounds = array<i64: 4, 1>}, {pipeline_mode = #tpu.pipeline_mode<synchronous>, transform_indices = @transform_4, window_bounds = array<i64: 4, 1>}, {pipeline_mode = #tpu.pipeline_mode<synchronous>, transform_indices = @transform_5, window_bounds = array<i64: 128, 128>}, {transform_indices = @transform_6, window_bounds = array<i64: 1, 4, 256>}]} {
    %c0 = arith.constant 0 : index
    %c0_0 = arith.constant 0 : index
    %c0_1 = arith.constant 0 : index
    %0 = vector.load %arg1[%c0, %c0_0, %c0_1] : memref<1x4x256xf32, #tpu.memory_space<vmem>>, vector<1x4x256xf32>
    %1 = vector.shape_cast %0 : vector<1x4x256xf32> to vector<4x256xf32>
    %2 = arith.truncf %1 : vector<4x256xf32> to vector<4x256xbf16>
    %c0_2 = arith.constant 0 : index
    %c0_3 = arith.constant 0 : index
    %3 = vector.load %arg2[%c0_2, %c0_3] : memref<384x4xf32, #tpu.memory_space<vmem>>, vector<384x4xf32>
    %4 = arith.truncf %3 : vector<384x4xf32> to vector<384x4xbf16>
    %cst = arith.constant dense<0.000000e+00> : vector<384x256xf32>
    %5 = tpu.matmul %4, %2, %cst {dimension_numbers = #tpu.dot_dimension_numbers<[1], [0], [0], [1], [0, 0, 1, 1], [], []>} : vector<384x4xbf16>, vector<4x256xbf16>, vector<384x256xf32> -> vector<384x256xf32>
    %6 = vector.extract_strided_slice %5 {offsets = [0, 0], sizes = [128, 256], strides = [1, 1]} : vector<384x256xf32> to vector<128x256xf32>
    %7 = vector.extract_strided_slice %5 {offsets = [128, 0], sizes = [128, 256], strides = [1, 1]} : vector<384x256xf32> to vector<128x256xf32>
    %8 = vector.extract_strided_slice %5 {offsets = [256, 0], sizes = [128, 256], strides = [1, 1]} : vector<384x256xf32> to vector<128x256xf32>
    %c0_4 = arith.constant 0 : index
    %c0_5 = arith.constant 0 : index
    %9 = vector.load %arg6[%c0_4, %c0_5] : memref<128x128xf32, #tpu.memory_space<vmem>>, vector<128x128xf32>
    %cst_6 = arith.constant dense<0xFF800000> : vector<256xf32>
    %10 = vector.multi_reduction <maximumf>, %6, %cst_6 [0] : vector<128x256xf32> to vector<256xf32>
    %11 = vector.shape_cast %10 : vector<256xf32> to vector<1x256xf32>
    %12 = vector.broadcast %11 : vector<1x256xf32> to vector<128x256xf32>
    %13 = arith.subf %6, %12 : vector<128x256xf32>
    %14 = math.exp %13 : vector<128x256xf32>
    %15 = arith.truncf %9 : vector<128x128xf32> to vector<128x128xbf16>
    %16 = arith.truncf %14 : vector<128x256xf32> to vector<128x256xbf16>
    %cst_7 = arith.constant dense<0.000000e+00> : vector<128x256xf32>
    %17 = tpu.matmul %15, %16, %cst_7 {dimension_numbers = #tpu.dot_dimension_numbers<[1], [0], [0], [1], [0, 0, 1, 1], [], []>} : vector<128x128xbf16>, vector<128x256xbf16>, vector<128x256xf32> -> vector<128x256xf32>
    %18 = tpu.reciprocal %17 {approx = true} : vector<128x256xf32> -> vector<128x256xf32>
    %19 = arith.mulf %14, %18 : vector<128x256xf32>
    %cst_8 = arith.constant dense<0xFF800000> : vector<128xf32>
    %20 = vector.multi_reduction <maximumf>, %7, %cst_8 [1] : vector<128x256xf32> to vector<128xf32>
    %21 = vector.shape_cast %20 : vector<128xf32> to vector<128x1xf32>
    %22 = vector.broadcast %21 : vector<128x1xf32> to vector<128x256xf32>
    %23 = arith.subf %7, %22 : vector<128x256xf32>
    %24 = math.exp %23 : vector<128x256xf32>
    %cst_9 = arith.constant dense<0.000000e+00> : vector<128xf32>
    %25 = vector.multi_reduction <add>, %24, %cst_9 [1] : vector<128x256xf32> to vector<128xf32>
    %26 = vector.shape_cast %25 : vector<128xf32> to vector<128x1xf32>
    %27 = tpu.reciprocal %26 {approx = true} : vector<128x1xf32> -> vector<128x1xf32>
    %28 = vector.broadcast %27 : vector<128x1xf32> to vector<128x256xf32>
    %29 = arith.mulf %24, %28 : vector<128x256xf32>
    %30 = arith.truncf %8 : vector<128x256xf32> to vector<128x256xbf16>
    %31 = arith.truncf %29 : vector<128x256xf32> to vector<128x256xbf16>
    %cst_10 = arith.constant dense<0.000000e+00> : vector<128x128xf32>
    %32 = tpu.matmul %30, %31, %cst_10 {dimension_numbers = #tpu.dot_dimension_numbers<[1], [1], [0], [0], [0, 0, 1, 0], [], []>} : vector<128x256xbf16>, vector<128x256xbf16>, vector<128x128xf32> -> vector<128x128xf32>
    %33 = arith.mulf %32, %9 : vector<128x128xf32>
    %34 = arith.truncf %33 : vector<128x128xf32> to vector<128x128xbf16>
    %35 = arith.truncf %19 : vector<128x256xf32> to vector<128x256xbf16>
    %cst_11 = arith.constant dense<0.000000e+00> : vector<128x256xf32>
    %36 = tpu.matmul %34, %35, %cst_11 {dimension_numbers = #tpu.dot_dimension_numbers<[1], [0], [0], [1], [0, 0, 1, 1], [], []>} : vector<128x128xbf16>, vector<128x256xbf16>, vector<128x256xf32> -> vector<128x256xf32>
    %c0_12 = arith.constant 0 : index
    %c0_13 = arith.constant 0 : index
    %37 = vector.load %arg3[%c0_12, %c0_13] : memref<4x128xf32, #tpu.memory_space<vmem>>, vector<4x128xf32>
    %38 = arith.truncf %37 : vector<4x128xf32> to vector<4x128xbf16>
    %39 = arith.truncf %36 : vector<128x256xf32> to vector<128x256xbf16>
    %cst_14 = arith.constant dense<0.000000e+00> : vector<4x256xf32>
    %40 = tpu.matmul %38, %39, %cst_14 {dimension_numbers = #tpu.dot_dimension_numbers<[1], [0], [0], [1], [0, 0, 1, 1], [], []>} : vector<4x128xbf16>, vector<128x256xbf16>, vector<4x256xf32> -> vector<4x256xf32>
    %c0_15 = arith.constant 0 : index
    %c0_16 = arith.constant 0 : index
    %41 = vector.load %arg4[%c0_15, %c0_16] : memref<4x1xf32, #tpu.memory_space<vmem>>, vector<4x1xf32>
    %42 = vector.broadcast %41 : vector<4x1xf32> to vector<4x256xf32>
    %43 = arith.addf %40, %42 : vector<4x256xf32>
    %cst_17 = arith.constant dense<0.000000e+00> : vector<256xf32>
    %44 = vector.multi_reduction <add>, %43, %cst_17 [0] : vector<4x256xf32> to vector<256xf32>
    %45 = vector.shape_cast %44 : vector<256xf32> to vector<1x256xf32>
    %cst_18 = arith.constant 4.000000e+00 : f32
    %46 = vector.broadcast %cst_18 : f32 to vector<1x256xf32>
    %47 = arith.divf %45, %46 : vector<1x256xf32>
    %48 = vector.broadcast %47 : vector<1x256xf32> to vector<4x256xf32>
    %49 = arith.subf %43, %48 : vector<4x256xf32>
    %50 = arith.mulf %49, %49 : vector<4x256xf32>
    %cst_19 = arith.constant dense<0.000000e+00> : vector<256xf32>
    %51 = vector.multi_reduction <add>, %50, %cst_19 [0] : vector<4x256xf32> to vector<256xf32>
    %52 = vector.shape_cast %51 : vector<256xf32> to vector<1x256xf32>
    %cst_20 = arith.constant 4.000000e+00 : f32
    %53 = vector.broadcast %cst_20 : f32 to vector<1x256xf32>
    %54 = arith.divf %52, %53 : vector<1x256xf32>
    %55 = vector.broadcast %47 : vector<1x256xf32> to vector<4x256xf32>
    %56 = arith.subf %43, %55 : vector<4x256xf32>
    %cst_21 = arith.constant 9.99999974E-6 : f32
    %57 = vector.broadcast %cst_21 : f32 to vector<1x256xf32>
    %58 = arith.addf %54, %57 : vector<1x256xf32>
    %59 = math.rsqrt %58 : vector<1x256xf32>
    %60 = vector.broadcast %59 : vector<1x256xf32> to vector<4x256xf32>
    %61 = arith.mulf %56, %60 : vector<4x256xf32>
    %c0_22 = arith.constant 0 : index
    %c0_23 = arith.constant 0 : index
    %62 = vector.load %arg5[%c0_22, %c0_23] : memref<4x1xf32, #tpu.memory_space<vmem>>, vector<4x1xf32>
    %63 = vector.broadcast %62 : vector<4x1xf32> to vector<4x256xf32>
    %64 = arith.mulf %61, %63 : vector<4x256xf32>
    %c0_24 = arith.constant 0 : index
    %c0_25 = arith.constant 0 : index
    %c0_26 = arith.constant 0 : index
    %65 = vector.load %arg7[%c0_24, %c0_25, %c0_26] : memref<1x4x256xf32, #tpu.memory_space<vmem>>, vector<1x4x256xf32>
    %66 = vector.shape_cast %65 : vector<1x4x256xf32> to vector<4x256xf32>
    %67 = vector.shape_cast %64 : vector<4x256xf32> to vector<1x4x256xf32>
    tpu.vector_store %arg7[%c0_24, %c0_25, %c0_26], %67 {strides = array<i32>} : memref<1x4x256xf32, #tpu.memory_space<vmem>>, vector<1x4x256xf32>,
    return
  }
  func.func @transform_0(%arg0: i32) -> (i32, i32, i32) {
    %c0_i32 = arith.constant 0 : i32
    %c0_i32_0 = arith.constant 0 : i32
    %c0_i32_1 = arith.constant 0 : i32
    return %arg0, %c0_i32, %c0_i32_0 : i32, i32, i32
  }
  func.func @transform_1(%arg0: i32) -> (i32, i32) {
    %c0_i32 = arith.constant 0 : i32
    %c0_i32_0 = arith.constant 0 : i32
    %c0_i32_1 = arith.constant 0 : i32
    return %c0_i32, %c0_i32_0 : i32, i32
  }
  func.func @transform_2(%arg0: i32) -> (i32, i32) {
    %c0_i32 = arith.constant 0 : i32
    %c0_i32_0 = arith.constant 0 : i32
    %c0_i32_1 = arith.constant 0 : i32
    return %c0_i32, %c0_i32_0 : i32, i32
  }
  func.func @transform_3(%arg0: i32) -> (i32, i32) {
    %c0_i32 = arith.constant 0 : i32
    %c0_i32_0 = arith.constant 0 : i32
    %c0_i32_1 = arith.constant 0 : i32
    return %c0_i32, %c0_i32_0 : i32, i32
  }
  func.func @transform_4(%arg0: i32) -> (i32, i32) {
    %c0_i32 = arith.constant 0 : i32
    %c0_i32_0 = arith.constant 0 : i32
    %c0_i32_1 = arith.constant 0 : i32
    return %c0_i32, %c0_i32_0 : i32, i32
  }
  func.func @transform_5(%arg0: i32) -> (i32, i32) {
    %c0_i32 = arith.constant 0 : i32
    %c0_i32_0 = arith.constant 0 : i32
    %c0_i32_1 = arith.constant 0 : i32
    return %c0_i32, %c0_i32_0 : i32, i32
  }
  func.func @transform_6(%arg0: i32) -> (i32, i32, i32) {
    %c0_i32 = arith.constant 0 : i32
    %c0_i32_0 = arith.constant 0 : i32
    %c0_i32_1 = arith.constant 0 : i32
    return %arg0, %c0_i32, %c0_i32_0 : i32, i32, i32
  }
}

</mosaic_0001>

<llo_original>
// kernel: tpu_custom_call.1
$region0: #{tpu_custom_call.1}
  #allocation0 [shape = 'u32[]', space=smem, size = 0x4, offset = 0x4, fixed_abs, tag = 'smem constant byte address 0x4 - core index']
  #allocation1 [shape = 'u32[144,128]{1,0:T(1,128)}', space=vmem, size = 0x12000, scoped, tag = 'internal scratch']
  %s0 = inlined_call_operand.vmem [shape: f32[2,4,256], index: 0, kind: input, shape index: {}]
  %s1 = inlined_call_operand.vmem [shape: f32[384,4], index: 1, kind: input, shape index: {}]
  %s2 = inlined_call_operand.vmem [shape: f32[4,128], index: 2, kind: input, shape index: {}]
  %s3 = inlined_call_operand.vmem [shape: f32[4,1], index: 3, kind: input, shape index: {}]
  %s4 = inlined_call_operand.vmem [shape: f32[4,1], index: 4, kind: input, shape index: {}]
  %s5 = inlined_call_operand.vmem [shape: f32[128,128], index: 5, kind: input, shape index: {}]
  %s6 = inlined_call_operand.hbm [shape: f32[2,4,256], index: 6, kind: output, shape index: {}]
  %s7 = sld [smem:[#allocation0]]
  $region57: #{tpu_custom_call.1} parent=0
    _
  %s9 = ssub.s32 1, %s7
  %s10 = scalar_select 0, %s9, %s7
  $region1: #{tpu_custom_call.1} parent=0
    #allocation2 [shape = 'u8[8192]{0}', space=vmem, size = 0x2000, scoped, tag = 'output window, operand 0']
    #allocation3 [shape = 's32[2]{0}', space=sflag, size = 0x8, scoped, tag = 'scoped memory for tpu_custom_call.1']
    %11 = vsyncpa [#allocation3], 0
    %s12 = scalar_lea.sflag [#allocation3], 1
    %13 = vsyncpa %s12, 0
    loop: start=0, step=1, limit=4
    $region2: #{tpu_custom_call.1} parent=1 // loop_pre_header
      _
    $region3: #{tpu_custom_call.1} parent=1 // loop_header
      %s15 = sphi 0, %s19
      %p16 = scmp.ge.s32.totalorder %s15, 4
      %s25 = sphi 0, %s27
      %s28 = sphi 0, %s25
      %s29 = sphi 0, %s28
      %s45 = sphi 0, %s29
      %s49 = sphi 0, %s49
      %s51 = sphi 0, %s49
      %s52 = sphi 0, %s51
      %s66 = sphi 0, %s52
      %s70 = sphi 0, %s70
      %s72 = sphi 0, %s70
      %s73 = sphi 0, %s72
      %s87 = sphi 0, %s73
      %s91 = sphi 0, %s91
      %s93 = sphi 0, %s91
      %s94 = sphi 0, %s93
      %s108 = sphi 0, %s94
      %s112 = sphi 0, %s112
      %s114 = sphi 0, %s112
      %s115 = sphi 0, %s114
      %s129 = sphi 0, %s115
      %s133 = sphi 0, %s133
      %s135 = sphi 0, %s133
      %s136 = sphi 0, %s135
      %s150 = sphi 0, %s136
      %s156 = sphi 0, %s158
      %s159 = sphi 0, %s156
      %s160 = sphi 0, %s159
      %s176 = sphi 0, %s160
    $region4: #{tpu_custom_call.1} parent=1 // loop_header_branch
      %18 = sbr.rel (%p16) target = $region8
    $region5: #{tpu_custom_call.1} parent=1 // loop_body
      %s20 = ssub.s32 %s15, 1
      %s21 = ssub.s32 %s15, 2
      %s22 = sadd.s32 %s15, 1
      %s23 = ssub.s32 %s15, %s22
      %p24 = scmp.eq.s32.totalorder %s23, 0
      %s26 = sadd.s32 %s25, 1
      %s27 = scalar_select %p24, %s25, %s26
      %p30 = pneg %p24
      %p31 = scmp.eq.s32.totalorder %s15, 1
      %p32 = por %p30, %p31
      %p33 = scmp.ne.s32.totalorder %s25, %s28
      %p34 = scmp.eq.s32.totalorder %s15, 0
      %p35 = por %p33, %p34
      %p36 = scmp.ne.s32.totalorder %s25, %s28
      %p37 = scmp.eq.s32.totalorder %s20, 1
      %p38 = por %p36, %p37
      %p39 = scmp.ne.s32.totalorder %s28, %s29
      %p40 = scmp.eq.s32.totalorder %s20, 0
      %p41 = por %p39, %p40
      %p42 = scmp.ne.s32.totalorder %s28, %s29
      %p43 = scmp.eq.s32.totalorder %s21, 1
      %p44 = por %p42, %p43
      %p46 = scmp.ne.s32.totalorder %s29, %s45
      %p47 = scmp.eq.s32.totalorder %s21, 0
      %p48 = por %p46, %p47
      %s50 = sadd.s32 %s49, 1
      %p53 = scmp.eq.s32.totalorder %s15, 1
      %p54 = scmp.ne.s32.totalorder %s49, %s51
      %p55 = scmp.eq.s32.totalorder %s15, 0
      %p56 = por %p54, %p55
      %p57 = scmp.ne.s32.totalorder %s49, %s51
      %p58 = scmp.eq.s32.totalorder %s20, 1
      %p59 = por %p57, %p58
      %p60 = scmp.ne.s32.totalorder %s51, %s52
      %p61 = scmp.eq.s32.totalorder %s20, 0
      %p62 = por %p60, %p61
      %p63 = scmp.ne.s32.totalorder %s51, %s52
      %p64 = scmp.eq.s32.totalorder %s21, 1
      %p65 = por %p63, %p64
      %p67 = scmp.ne.s32.totalorder %s52, %s66
      %p68 = scmp.eq.s32.totalorder %s21, 0
      %p69 = por %p67, %p68
      %s71 = sadd.s32 %s70, 1
      %p74 = scmp.eq.s32.totalorder %s15, 1
      %p75 = scmp.ne.s32.totalorder %s70, %s72
      %p76 = scmp.eq.s32.totalorder %s15, 0
      %p77 = por %p75, %p76
      %p78 = scmp.ne.s32.totalorder %s70, %s72
      %p79 = scmp.eq.s32.totalorder %s20, 1
      %p80 = por %p78, %p79
      %p81 = scmp.ne.s32.totalorder %s72, %s73
      %p82 = scmp.eq.s32.totalorder %s20, 0
      %p83 = por %p81, %p82
      %p84 = scmp.ne.s32.totalorder %s72, %s73
      %p85 = scmp.eq.s32.totalorder %s21, 1
      %p86 = por %p84, %p85
      %p88 = scmp.ne.s32.totalorder %s73, %s87
      %p89 = scmp.eq.s32.totalorder %s21, 0
      %p90 = por %p88, %p89
      %s92 = sadd.s32 %s91, 1
      %p95 = scmp.eq.s32.totalorder %s15, 1
      %p96 = scmp.ne.s32.totalorder %s91, %s93
      %p97 = scmp.eq.s32.totalorder %s15, 0
      %p98 = por %p96, %p97
      %p99 = scmp.ne.s32.totalorder %s91, %s93
      %p100 = scmp.eq.s32.totalorder %s20, 1
      %p101 = por %p99, %p100
      %p102 = scmp.ne.s32.totalorder %s93, %s94
      %p103 = scmp.eq.s32.totalorder %s20, 0
      %p104 = por %p102, %p103
      %p105 = scmp.ne.s32.totalorder %s93, %s94
      %p106 = scmp.eq.s32.totalorder %s21, 1
      %p107 = por %p105, %p106
      %p109 = scmp.ne.s32.totalorder %s94, %s108
      %p110 = scmp.eq.s32.totalorder %s21, 0
      %p111 = por %p109, %p110
      %s113 = sadd.s32 %s112, 1
      %p116 = scmp.eq.s32.totalorder %s15, 1
      %p117 = scmp.ne.s32.totalorder %s112, %s114
      %p118 = scmp.eq.s32.totalorder %s15, 0
      %p119 = por %p117, %p118
      %p120 = scmp.ne.s32.totalorder %s112, %s114
      %p121 = scmp.eq.s32.totalorder %s20, 1
      %p122 = por %p120, %p121
      %p123 = scmp.ne.s32.totalorder %s114, %s115
      %p124 = scmp.eq.s32.totalorder %s20, 0
      %p125 = por %p123, %p124
      %p126 = scmp.ne.s32.totalorder %s114, %s115
      %p127 = scmp.eq.s32.totalorder %s21, 1
      %p128 = por %p126, %p127
      %p130 = scmp.ne.s32.totalorder %s115, %s129
      %p131 = scmp.eq.s32.totalorder %s21, 0
      %p132 = por %p130, %p131
      %s134 = sadd.s32 %s133, 1
      %p137 = scmp.eq.s32.totalorder %s15, 1
      %p138 = scmp.ne.s32.totalorder %s133, %s135
      %p139 = scmp.eq.s32.totalorder %s15, 0
      %p140 = por %p138, %p139
      %p141 = scmp.ne.s32.totalorder %s133, %s135
      %p142 = scmp.eq.s32.totalorder %s20, 1
      %p143 = por %p141, %p142
      %p144 = scmp.ne.s32.totalorder %s135, %s136
      %p145 = scmp.eq.s32.totalorder %s20, 0
      %p146 = por %p144, %p145
      %p147 = scmp.ne.s32.totalorder %s135, %s136
      %p148 = scmp.eq.s32.totalorder %s21, 1
      %p149 = por %p147, %p148
      %p151 = scmp.ne.s32.totalorder %s136, %s150
      %p152 = scmp.eq.s32.totalorder %s21, 0
      %p153 = por %p151, %p152
      %s154 = ssub.s32 %s15, %s22
      %p155 = scmp.eq.s32.totalorder %s154, 0
      %s157 = sadd.s32 %s156, 1
      %s158 = scalar_select %p155, %s156, %s157
      %p161 = pneg %p155
      %p162 = scmp.eq.s32.totalorder %s15, 1
      %p163 = por %p161, %p162
      %p164 = scmp.ne.s32.totalorder %s156, %s159
      %p165 = scmp.eq.s32.totalorder %s15, 0
      %p166 = por %p164, %p165
      %p167 = scmp.ne.s32.totalorder %s156, %s159
      %p168 = scmp.eq.s32.totalorder %s20, 1
      %p169 = por %p167, %p168
      %p170 = scmp.ne.s32.totalorder %s159, %s160
      %p171 = scmp.eq.s32.totalorder %s20, 0
      %p172 = por %p170, %p171
      %p173 = scmp.ne.s32.totalorder %s159, %s160
      %p174 = scmp.eq.s32.totalorder %s21, 1
      %p175 = por %p173, %p174
      %p177 = scmp.ne.s32.totalorder %s160, %s176
      %p178 = scmp.eq.s32.totalorder %s21, 0
      %p179 = por %p177, %p178
      %p180 = scmp.le.s32.totalorder 1, %s15
      %p181 = scmp.lt.s32.totalorder %s15, 3
      %p182 = pnand %p180, %p181
      %p183 = pneg %p182
      // Predicated region
      $region9: #{tpu_custom_call.1} parent=5 // pred_check
        _
      $region10: #{tpu_custom_call.1} parent=5 // pred_check_branch
        %185 = sbr.rel (%p182) target = $region12
      $region11: #{tpu_custom_call.1} parent=5 // pred_region
        %s186 = ssub.s32 %s15, 1
        // Predicated region
        $region13: #{tpu_custom_call.1} parent=11 // pred_check
          %p187 = pneg %p62
        $region14: #{tpu_custom_call.1} parent=11 // pred_check_branch
          %189 = sbr.rel (%p187) target = $region16
        $region15: #{tpu_custom_call.1} parent=11 // pred_region
          _
        $region16: #{tpu_custom_call.1} parent=11 // pred_fallthru
          _
        // Predicated region
        $region17: #{tpu_custom_call.1} parent=11 // pred_check
          %p190 = pneg %p83
        $region18: #{tpu_custom_call.1} parent=11 // pred_check_branch
          %192 = sbr.rel (%p190) target = $region20
        $region19: #{tpu_custom_call.1} parent=11 // pred_region
          _
        $region20: #{tpu_custom_call.1} parent=11 // pred_fallthru
          _
        // Predicated region
        $region21: #{tpu_custom_call.1} parent=11 // pred_check
          %p193 = pneg %p104
        $region22: #{tpu_custom_call.1} parent=11 // pred_check_branch
          %195 = sbr.rel (%p193) target = $region24
        $region23: #{tpu_custom_call.1} parent=11 // pred_region
          _
        $region24: #{tpu_custom_call.1} parent=11 // pred_fallthru
          _
        // Predicated region
        $region25: #{tpu_custom_call.1} parent=11 // pred_check
          %p196 = pneg %p125
        $region26: #{tpu_custom_call.1} parent=11 // pred_check_branch
          %198 = sbr.rel (%p196) target = $region28
        $region27: #{tpu_custom_call.1} parent=11 // pred_region
          _
        $region28: #{tpu_custom_call.1} parent=11 // pred_fallthru
          _
        // Predicated region
        $region29: #{tpu_custom_call.1} parent=11 // pred_check
          %p199 = pneg %p146
        $region30: #{tpu_custom_call.1} parent=11 // pred_check_branch
          %201 = sbr.rel (%p199) target = $region32
        $region31: #{tpu_custom_call.1} parent=11 // pred_region
          _
        $region32: #{tpu_custom_call.1} parent=11 // pred_fallthru
          _
      $region12: #{tpu_custom_call.1} parent=5 // pred_fallthru
        _
      %p202 = scmp.lt.s32.totalorder %s15, 2
      // Predicated region
      $region33: #{tpu_custom_call.1} parent=5 // pred_check
        %p203 = pneg %p202
      $region34: #{tpu_custom_call.1} parent=5 // pred_check_branch
        %205 = sbr.rel (%p203) target = $region36
      $region35: #{tpu_custom_call.1} parent=5 // pred_region
        // Predicated region
        $region37: #{tpu_custom_call.1} parent=35 // pred_check
          %p206 = pneg %p35
        $region38: #{tpu_custom_call.1} parent=35 // pred_check_branch
          %208 = sbr.rel (%p206) target = $region40
        $region39: #{tpu_custom_call.1} parent=35 // pred_region
          %p209 = scmp.lt.s32.totalorder %s15, 1
          %s210 = scalar_select %p209, %s15, 1
          %s211 = smul.addr %s210, 2
          %s212 = smul.addr %s211, 4
          %s213 = scalar_lea.vmem %s0, %s212
        $region40: #{tpu_custom_call.1} parent=35 // pred_fallthru
          _
      $region36: #{tpu_custom_call.1} parent=5 // pred_fallthru
        _
      %p214 = scmp.le.s32.totalorder 1, %s15
      %p215 = scmp.lt.s32.totalorder %s15, 3
      %p216 = pnand %p214, %p215
      %p217 = pneg %p216
      // Predicated region
      $region41: #{tpu_custom_call.1} parent=5 // pred_check
        _
      $region42: #{tpu_custom_call.1} parent=5 // pred_check_branch
        %219 = sbr.rel (%p216) target = $region44
      $region43: #{tpu_custom_call.1} parent=5 // pred_region
        %s220 = ssub.s32 %s15, 1
        %p221 = scmp.lt.s32.totalorder %s20, 1
        %s222 = scalar_select %p221, %s20, 1
        %s223 = smul.addr %s222, 2
        %s224 = smul.addr %s223, 4
        %s225 = scalar_lea.vmem %s0, %s224
        %p226 = pneg %p41
        %p227 = pneg %p38
        %p228 = pneg %p62
        %p229 = pneg %p59
        %p230 = pneg %p83
        %p231 = pneg %p80
        %p232 = pneg %p104
        %p233 = pneg %p101
        %p234 = pneg %p125
        %p235 = pneg %p122
        %p236 = pneg %p146
        %p237 = pneg %p143
        %p238 = pneg %p172
        %p239 = pneg %p169
        %s240 = sand.u32 %s159, 1
        %s241 = scalar_lea.sflag [#allocation3], %s240
        %s242 = sand.u32 %s159, 1
        %s243 = smul.addr %s242, 8
        %s244 = scalar_lea.vmem [#allocation2], %s243
        %p245 = scmp.lt.s32.totalorder %s20, 1
        %s246 = scalar_select %p245, %s20, 1
        %s247 = smul.addr %s246, 2
        %s248 = smul.addr %s247, 4
        %s249 = scalar_lea.vmem %s0, %s248
        %v251 = vld [vmem:[%s249] sm:$0xff]
        %v253 = vcombine.high %v251, %v251
        %v255 = vpack.c.bf16 %v251, %v251
        %v256 = vpack.c.bf16 %v253, %v253
        %v257 = vld [vmem:[%s1] sm:$0xff]
        %v258 = vld [vmem:[%s1 + $0x8] sm:$0xff]
        %v259 = vld [vmem:[%s1 + $0x10] sm:$0xff]
        %v260 = vld [vmem:[%s1 + $0x18] sm:$0xff]
        %v261 = vld [vmem:[%s1 + $0x20] sm:$0xff]
        %v262 = vld [vmem:[%s1 + $0x28] sm:$0xff]
        %v263 = vld [vmem:[%s1 + $0x30] sm:$0xff]
        %v264 = vld [vmem:[%s1 + $0x38] sm:$0xff]
        %v265 = vld [vmem:[%s1 + $0x40] sm:$0xff]
        %v266 = vld [vmem:[%s1 + $0x48] sm:$0xff]
        %v267 = vld [vmem:[%s1 + $0x50] sm:$0xff]
        %v268 = vld [vmem:[%s1 + $0x58] sm:$0xff]
        %v269 = vld [vmem:[%s1 + $0x60] sm:$0xff]
        %v270 = vld [vmem:[%s1 + $0x68] sm:$0xff]
        %v271 = vld [vmem:[%s1 + $0x70] sm:$0xff]
        %v272 = vld [vmem:[%s1 + $0x78] sm:$0xff]
        %v273 = vld [vmem:[%s1 + $0x80] sm:$0xff]
        %v274 = vld [vmem:[%s1 + $0x88] sm:$0xff]
        %v275 = vld [vmem:[%s1 + $0x90] sm:$0xff]
        %v276 = vld [vmem:[%s1 + $0x98] sm:$0xff]
        %v277 = vld [vmem:[%s1 + $0xa0] sm:$0xff]
        %v278 = vld [vmem:[%s1 + $0xa8] sm:$0xff]
        %v279 = vld [vmem:[%s1 + $0xb0] sm:$0xff]
        %v280 = vld [vmem:[%s1 + $0xb8] sm:$0xff]
        %v281 = vld [vmem:[%s1 + $0xc0] sm:$0xff]
        %v282 = vld [vmem:[%s1 + $0xc8] sm:$0xff]
        %v283 = vld [vmem:[%s1 + $0xd0] sm:$0xff]
        %v284 = vld [vmem:[%s1 + $0xd8] sm:$0xff]
        %v285 = vld [vmem:[%s1 + $0xe0] sm:$0xff]
        %v286 = vld [vmem:[%s1 + $0xe8] sm:$0xff]
        %v287 = vld [vmem:[%s1 + $0xf0] sm:$0xff]
        %v288 = vld [vmem:[%s1 + $0xf8] sm:$0xff]
        %v289 = vld [vmem:[%s1 + $0x100] sm:$0xff]
        %v290 = vld [vmem:[%s1 + $0x108] sm:$0xff]
        %v291 = vld [vmem:[%s1 + $0x110] sm:$0xff]
        %v292 = vld [vmem:[%s1 + $0x118] sm:$0xff]
        %v293 = vld [vmem:[%s1 + $0x120] sm:$0xff]
        %v294 = vld [vmem:[%s1 + $0x128] sm:$0xff]
        %v295 = vld [vmem:[%s1 + $0x130] sm:$0xff]
        %v296 = vld [vmem:[%s1 + $0x138] sm:$0xff]
        %v297 = vld [vmem:[%s1 + $0x140] sm:$0xff]
        %v298 = vld [vmem:[%s1 + $0x148] sm:$0xff]
        %v299 = vld [vmem:[%s1 + $0x150] sm:$0xff]
        %v300 = vld [vmem:[%s1 + $0x158] sm:$0xff]
        %v301 = vld [vmem:[%s1 + $0x160] sm:$0xff]
        %v302 = vld [vmem:[%s1 + $0x168] sm:$0xff]
        %v303 = vld [vmem:[%s1 + $0x170] sm:$0xff]
        %v304 = vld [vmem:[%s1 + $0x178] sm:$0xff]
        %v305 = vpack.c.bf16 %v258, %v257
        %v306 = vpack.c.bf16 %v260, %v259
        %v307 = vpack.c.bf16 %v262, %v261
        %v308 = vpack.c.bf16 %v264, %v263
        %v309 = vpack.c.bf16 %v266, %v265
        %v310 = vpack.c.bf16 %v268, %v267
        %v311 = vpack.c.bf16 %v270, %v269
        %v312 = vpack.c.bf16 %v272, %v271
        %v313 = vpack.c.bf16 %v274, %v273
        %v314 = vpack.c.bf16 %v276, %v275
        %v315 = vpack.c.bf16 %v278, %v277
        %v316 = vpack.c.bf16 %v280, %v279
        %v317 = vpack.c.bf16 %v282, %v281
        %v318 = vpack.c.bf16 %v284, %v283
        %v319 = vpack.c.bf16 %v286, %v285
        %v320 = vpack.c.bf16 %v288, %v287
        %v321 = vpack.c.bf16 %v290, %v289
        %v322 = vpack.c.bf16 %v292, %v291
        %v323 = vpack.c.bf16 %v294, %v293
        %v324 = vpack.c.bf16 %v296, %v295
        %v325 = vpack.c.bf16 %v298, %v297
        %v326 = vpack.c.bf16 %v300, %v299
        %v327 = vpack.c.bf16 %v302, %v301
        %v328 = vpack.c.bf16 %v304, %v303
        %vm329 = vcmask 31744
        %v331 = vsel %vm329, %v305, 0
        %v334 = vsel %vm329, %v306, 0
        %v337 = vsel %vm329, %v307, 0
        %v340 = vsel %vm329, %v308, 0
        %v343 = vsel %vm329, %v309, 0
        %v346 = vsel %vm329, %v310, 0
        %v349 = vsel %vm329, %v311, 0
        %v352 = vsel %vm329, %v312, 0
        %v355 = vsel %vm329, %v313, 0
        %v358 = vsel %vm329, %v314, 0
        %v361 = vsel %vm329, %v315, 0
        %v364 = vsel %vm329, %v316, 0
        %v367 = vsel %vm329, %v317, 0
        %v370 = vsel %vm329, %v318, 0
        %v373 = vsel %vm329, %v319, 0
        %v376 = vsel %vm329, %v320, 0
        %v379 = vsel %vm329, %v321, 0
        %v382 = vsel %vm329, %v322, 0
        %v385 = vsel %vm329, %v323, 0
        %v388 = vsel %vm329, %v324, 0
        %v391 = vsel %vm329, %v325, 0
        %v394 = vsel %vm329, %v326, 0
        %v397 = vsel %vm329, %v327, 0
        %v400 = vsel %vm329, %v328, 0
        %vm402 = vcmask 1041408
        %v404 = vsel %vm402, %v255, 0
        %v407 = vsel %vm402, %v256, 0
        %409 = vmatprep.subr.bf16.mxu0 0
        %410 = vmatpush1.bf16.msra.mxu0 0
        %411 = vmatprep.subr.bf16.mxu0 0
        %412 = vmatpush1.bf16.msra.mxu0 0
        %413 = vmatprep.subr.bf16.mxu0 0
        %414 = vmatpush1.bf16.msra.mxu0 0
        %415 = vmatprep.subr.bf16.mxu0 0
        %416 = vmatpush1.bf16.msra.mxu0 0
        %417 = vmatprep.subr.bf16.mxu0 0
        %418 = vmatpush1.bf16.msra.mxu0 0
        %419 = vmatprep.subr.bf16.mxu0 0
        %420 = vmatpush1.bf16.msra.mxu0 0
        %421 = vmatprep.subr.bf16.mxu0 0
        %422 = vmatpush1.bf16.msra.mxu0 0
        %423 = vmatprep.subr.bf16.mxu0 %v407
        %424 = vmatpush1.bf16.msra.mxu0 %v404
        %425 = vmatprep.subr.bf16.mxu0 0
        %426 = vmatpush2.bf16.msra.mxu0 0
        %427 = vmatprep.subr.bf16.mxu0 0
        %428 = vmatpush2.bf16.msra.mxu0 0
        %429 = vmatprep.subr.bf16.mxu0 0
        %430 = vmatpush2.bf16.msra.mxu0 0
        %431 = vmatprep.subr.bf16.mxu0 0
        %432 = vmatpush2.bf16.msra.mxu0 0
        %433 = vmatprep.subr.bf16.mxu0 0
        %434 = vmatpush2.bf16.msra.mxu0 0
        %435 = vmatprep.subr.bf16.mxu0 0
        %436 = vmatpush2.bf16.msra.mxu0 0
        %437 = vmatprep.subr.bf16.mxu0 0
        %438 = vmatpush2.bf16.msra.mxu0 0
        %439 = vmatprep.subr.bf16.mxu0 0
        %440 = vmatpush2.bf16.msra.mxu0 0
        %441 = vmatprep.mubr.bf16.mxu0 0
        %442 = vmatmul.mubr.bf16.gmra.mxu0 %v331
        %v443 = vpop.f32.mrf.mxu0
        %v444 = vadd.f32 0.0, %v443
        %v445 = vpop.f32.mrf.mxu0
        %v446 = vadd.f32 0.0, %v445
        %v447 = vpop.f32.mrf.mxu0
        %v448 = vadd.f32 0.0, %v447
        %v449 = vpop.f32.mrf.mxu0
        %v450 = vadd.f32 0.0, %v449
        %451 = vmatprep.mubr.bf16.mxu0 0
        %452 = vmatmul.mubr.bf16.gmra.mxu0 %v334
        %v453 = vpop.f32.mrf.mxu0
        %v454 = vadd.f32 0.0, %v453
        %v455 = vpop.f32.mrf.mxu0
        %v456 = vadd.f32 0.0, %v455
        %v457 = vpop.f32.mrf.mxu0
        %v458 = vadd.f32 0.0, %v457
        %v459 = vpop.f32.mrf.mxu0
        %v460 = vadd.f32 0.0, %v459
        %461 = vmatprep.mubr.bf16.mxu0 0
        %462 = vmatmul.mubr.bf16.gmra.mxu0 %v337
        %v463 = vpop.f32.mrf.mxu0
        %v464 = vadd.f32 0.0, %v463
        %v465 = vpop.f32.mrf.mxu0
        %v466 = vadd.f32 0.0, %v465
        %v467 = vpop.f32.mrf.mxu0
        %v468 = vadd.f32 0.0, %v467
        %v469 = vpop.f32.mrf.mxu0
        %v470 = vadd.f32 0.0, %v469
        %471 = vmatprep.mubr.bf16.mxu0 0
        %472 = vmatmul.mubr.bf16.gmra.mxu0 %v340
        %v473 = vpop.f32.mrf.mxu0
        %v474 = vadd.f32 0.0, %v473
        %v475 = vpop.f32.mrf.mxu0
        %v476 = vadd.f32 0.0, %v475
        %v477 = vpop.f32.mrf.mxu0
        %v478 = vadd.f32 0.0, %v477
        %v479 = vpop.f32.mrf.mxu0
        %v480 = vadd.f32 0.0, %v479
        %481 = vmatprep.mubr.bf16.mxu0 0
        %482 = vmatmul.mubr.bf16.gmra.mxu0 %v343
        %v483 = vpop.f32.mrf.mxu0
        %v484 = vadd.f32 0.0, %v483
        %v485 = vpop.f32.mrf.mxu0
        %v486 = vadd.f32 0.0, %v485
        %v487 = vpop.f32.mrf.mxu0
        %v488 = vadd.f32 0.0, %v487
        %v489 = vpop.f32.mrf.mxu0
        %v490 = vadd.f32 0.0, %v489
        %491 = vmatprep.mubr.bf16.mxu0 0
        %492 = vmatmul.mubr.bf16.gmra.mxu0 %v346
        %v493 = vpop.f32.mrf.mxu0
        %v494 = vadd.f32 0.0, %v493
        %v495 = vpop.f32.mrf.mxu0
        %v496 = vadd.f32 0.0, %v495
        %v497 = vpop.f32.mrf.mxu0
        %v498 = vadd.f32 0.0, %v497
        %v499 = vpop.f32.mrf.mxu0
        %v500 = vadd.f32 0.0, %v499
        %501 = vmatprep.mubr.bf16.mxu0 0
        %502 = vmatmul.mubr.bf16.gmra.mxu0 %v349
        %v503 = vpop.f32.mrf.mxu0
        %v504 = vadd.f32 0.0, %v503
        %v505 = vpop.f32.mrf.mxu0
        %v506 = vadd.f32 0.0, %v505
        %v507 = vpop.f32.mrf.mxu0
        %v508 = vadd.f32 0.0, %v507
        %v509 = vpop.f32.mrf.mxu0
        %v510 = vadd.f32 0.0, %v509
        %511 = vmatprep.mubr.bf16.mxu0 0
        %512 = vmatmul.mubr.bf16.gmra.mxu0 %v352
        %v513 = vpop.f32.mrf.mxu0
        %v514 = vadd.f32 0.0, %v513
        %v515 = vpop.f32.mrf.mxu0
        %v516 = vadd.f32 0.0, %v515
        %v517 = vpop.f32.mrf.mxu0
        %v518 = vadd.f32 0.0, %v517
        %v519 = vpop.f32.mrf.mxu0
        %v520 = vadd.f32 0.0, %v519
        %521 = vmatprep.mubr.bf16.mxu0 0
        %522 = vmatmul.mubr.bf16.gmra.mxu0 %v355
        %v523 = vpop.f32.mrf.mxu0
        %v524 = vadd.f32 0.0, %v523
        %v525 = vpop.f32.mrf.mxu0
        %v526 = vadd.f32 0.0, %v525
        %v527 = vpop.f32.mrf.mxu0
        %v528 = vadd.f32 0.0, %v527
        %v529 = vpop.f32.mrf.mxu0
        %v530 = vadd.f32 0.0, %v529
        %531 = vmatprep.mubr.bf16.mxu0 0
        %532 = vmatmul.mubr.bf16.gmra.mxu0 %v358
        %v533 = vpop.f32.mrf.mxu0
        %v534 = vadd.f32 0.0, %v533
        %v535 = vpop.f32.mrf.mxu0
        %v536 = vadd.f32 0.0, %v535
        %v537 = vpop.f32.mrf.mxu0
        %v538 = vadd.f32 0.0, %v537
        %v539 = vpop.f32.mrf.mxu0
        %v540 = vadd.f32 0.0, %v539
        %541 = vmatprep.mubr.bf16.mxu0 0
        %542 = vmatmul.mubr.bf16.gmra.mxu0 %v361
        %v543 = vpop.f32.mrf.mxu0
        %v544 = vadd.f32 0.0, %v543
        %v545 = vpop.f32.mrf.mxu0
        %v546 = vadd.f32 0.0, %v545
        %v547 = vpop.f32.mrf.mxu0
        %v548 = vadd.f32 0.0, %v547
        %v549 = vpop.f32.mrf.mxu0
        %v550 = vadd.f32 0.0, %v549
        %551 = vmatprep.mubr.bf16.mxu0 0
        %552 = vmatmul.mubr.bf16.gmra.mxu0 %v364
        %v553 = vpop.f32.mrf.mxu0
        %v554 = vadd.f32 0.0, %v553
        %v555 = vpop.f32.mrf.mxu0
        %v556 = vadd.f32 0.0, %v555
        %v557 = vpop.f32.mrf.mxu0
        %v558 = vadd.f32 0.0, %v557
        %v559 = vpop.f32.mrf.mxu0
        %v560 = vadd.f32 0.0, %v559
        %561 = vmatprep.mubr.bf16.mxu0 0
        %562 = vmatmul.mubr.bf16.gmra.mxu0 %v367
        %v563 = vpop.f32.mrf.mxu0
        %v564 = vadd.f32 0.0, %v563
        %v565 = vpop.f32.mrf.mxu0
        %v566 = vadd.f32 0.0, %v565
        %v567 = vpop.f32.mrf.mxu0
        %v568 = vadd.f32 0.0, %v567
        %v569 = vpop.f32.mrf.mxu0
        %v570 = vadd.f32 0.0, %v569
        %571 = vmatprep.mubr.bf16.mxu0 0
        %572 = vmatmul.mubr.bf16.gmra.mxu0 %v370
        %v573 = vpop.f32.mrf.mxu0
        %v574 = vadd.f32 0.0, %v573
        %v575 = vpop.f32.mrf.mxu0
        %v576 = vadd.f32 0.0, %v575
        %v577 = vpop.f32.mrf.mxu0
        %v578 = vadd.f32 0.0, %v577
        %v579 = vpop.f32.mrf.mxu0
        %v580 = vadd.f32 0.0, %v579
        %581 = vmatprep.mubr.bf16.mxu0 0
        %582 = vmatmul.mubr.bf16.gmra.mxu0 %v373
        %v583 = vpop.f32.mrf.mxu0
        %v584 = vadd.f32 0.0, %v583
        %v585 = vpop.f32.mrf.mxu0
        %v586 = vadd.f32 0.0, %v585
        %v587 = vpop.f32.mrf.mxu0
        %v588 = vadd.f32 0.0, %v587
        %v589 = vpop.f32.mrf.mxu0
        %v590 = vadd.f32 0.0, %v589
        %591 = vmatprep.mubr.bf16.mxu0 0
        %592 = vmatmul.mubr.bf16.gmra.mxu0 %v376
        %v593 = vpop.f32.mrf.mxu0
        %v594 = vadd.f32 0.0, %v593
        %v595 = vpop.f32.mrf.mxu0
        %v596 = vadd.f32 0.0, %v595
        %v597 = vpop.f32.mrf.mxu0
        %v598 = vadd.f32 0.0, %v597
        %v599 = vpop.f32.mrf.mxu0
        %v600 = vadd.f32 0.0, %v599
        %601 = vmatprep.mubr.bf16.mxu0 0
        %602 = vmatmul.mubr.bf16.gmra.mxu0 %v379
        %v603 = vpop.f32.mrf.mxu0
        %v604 = vadd.f32 0.0, %v603
        %v605 = vpop.f32.mrf.mxu0
        %v606 = vadd.f32 0.0, %v605
        %v607 = vpop.f32.mrf.mxu0
        %v608 = vadd.f32 0.0, %v607
        %v609 = vpop.f32.mrf.mxu0
        %v610 = vadd.f32 0.0, %v609
        %611 = vmatprep.mubr.bf16.mxu0 0
        %612 = vmatmul.mubr.bf16.gmra.mxu0 %v382
        %v613 = vpop.f32.mrf.mxu0
        %v614 = vadd.f32 0.0, %v613
        %v615 = vpop.f32.mrf.mxu0
        %v616 = vadd.f32 0.0, %v615
        %v617 = vpop.f32.mrf.mxu0
        %v618 = vadd.f32 0.0, %v617
        %v619 = vpop.f32.mrf.mxu0
        %v620 = vadd.f32 0.0, %v619
        %621 = vmatprep.mubr.bf16.mxu0 0
        %622 = vmatmul.mubr.bf16.gmra.mxu0 %v385
        %v623 = vpop.f32.mrf.mxu0
        %v624 = vadd.f32 0.0, %v623
        %v625 = vpop.f32.mrf.mxu0
        %v626 = vadd.f32 0.0, %v625
        %v627 = vpop.f32.mrf.mxu0
        %v628 = vadd.f32 0.0, %v627
        %v629 = vpop.f32.mrf.mxu0
        %v630 = vadd.f32 0.0, %v629
        %631 = vmatprep.mubr.bf16.mxu0 0
        %632 = vmatmul.mubr.bf16.gmra.mxu0 %v388
        %v633 = vpop.f32.mrf.mxu0
        %v634 = vadd.f32 0.0, %v633
        %v635 = vpop.f32.mrf.mxu0
        %v636 = vadd.f32 0.0, %v635
        %v637 = vpop.f32.mrf.mxu0
        %v638 = vadd.f32 0.0, %v637
        %v639 = vpop.f32.mrf.mxu0
        %v640 = vadd.f32 0.0, %v639
        %641 = vmatprep.mubr.bf16.mxu0 0
        %642 = vmatmul.mubr.bf16.gmra.mxu0 %v391
        %v643 = vpop.f32.mrf.mxu0
        %v644 = vadd.f32 0.0, %v643
        %v645 = vpop.f32.mrf.mxu0
        %v646 = vadd.f32 0.0, %v645
        %v647 = vpop.f32.mrf.mxu0
        %v648 = vadd.f32 0.0, %v647
        %v649 = vpop.f32.mrf.mxu0
        %v650 = vadd.f32 0.0, %v649
        %651 = vmatprep.mubr.bf16.mxu0 0
        %652 = vmatmul.mubr.bf16.gmra.mxu0 %v394
        %v653 = vpop.f32.mrf.mxu0
        %v654 = vadd.f32 0.0, %v653
        %v655 = vpop.f32.mrf.mxu0
        %v656 = vadd.f32 0.0, %v655
        %v657 = vpop.f32.mrf.mxu0
        %v658 = vadd.f32 0.0, %v657
        %v659 = vpop.f32.mrf.mxu0
        %v660 = vadd.f32 0.0, %v659
        %661 = vmatprep.mubr.bf16.mxu0 0
        %662 = vmatmul.mubr.bf16.gmra.mxu0 %v397
        %v663 = vpop.f32.mrf.mxu0
        %v664 = vadd.f32 0.0, %v663
        %v665 = vpop.f32.mrf.mxu0
        %v666 = vadd.f32 0.0, %v665
        %v667 = vpop.f32.mrf.mxu0
        %v668 = vadd.f32 0.0, %v667
        %v669 = vpop.f32.mrf.mxu0
        %v670 = vadd.f32 0.0, %v669
        %671 = vmatprep.mubr.bf16.mxu0 0
        %672 = vmatmul.mubr.bf16.gmra.mxu0 %v400
        %v673 = vpop.f32.mrf.mxu0
        %v674 = vadd.f32 0.0, %v673
        %v675 = vpop.f32.mrf.mxu0
        %v676 = vadd.f32 0.0, %v675
        %v677 = vpop.f32.mrf.mxu0
        %v678 = vadd.f32 0.0, %v677
        %v679 = vpop.f32.mrf.mxu0
        %v680 = vadd.f32 0.0, %v679
        %681 = vdwg.mxu0
        %v682 = vld [vmem:[%s5] sm:$0xff]
        %v683 = vld [vmem:[%s5 + $0x8] sm:$0xff]
        %v684 = vld [vmem:[%s5 + $0x10] sm:$0xff]
        %v685 = vld [vmem:[%s5 + $0x18] sm:$0xff]
        %v686 = vld [vmem:[%s5 + $0x20] sm:$0xff]
        %v687 = vld [vmem:[%s5 + $0x28] sm:$0xff]
        %v688 = vld [vmem:[%s5 + $0x30] sm:$0xff]
        %v689 = vld [vmem:[%s5 + $0x38] sm:$0xff]
        %v690 = vld [vmem:[%s5 + $0x40] sm:$0xff]
        %v691 = vld [vmem:[%s5 + $0x48] sm:$0xff]
        %v692 = vld [vmem:[%s5 + $0x50] sm:$0xff]
        %v693 = vld [vmem:[%s5 + $0x58] sm:$0xff]
        %v694 = vld [vmem:[%s5 + $0x60] sm:$0xff]
        %v695 = vld [vmem:[%s5 + $0x68] sm:$0xff]
        %v696 = vld [vmem:[%s5 + $0x70] sm:$0xff]
        %v697 = vld [vmem:[%s5 + $0x78] sm:$0xff]
        %v698 = vmax.f32 %v444, %v454
        %v699 = vmax.f32 %v448, %v458
        %v700 = vmax.f32 %v698, %v464
        %v701 = vmax.f32 %v699, %v468
        %v702 = vmax.f32 %v700, %v474
        %v703 = vmax.f32 %v701, %v478
        %v704 = vmax.f32 %v702, %v484
        %v705 = vmax.f32 %v703, %v488
        %v706 = vmax.f32 %v704, %v494
        %v707 = vmax.f32 %v705, %v498
        %v708 = vmax.f32 %v706, %v504
        %v709 = vmax.f32 %v707, %v508
        %v710 = vmax.f32 %v708, %v514
        %v711 = vmax.f32 %v709, %v518
        %v712 = vmax.f32 %v710, %v711
        %v713 = vrot.slane %v712, 4
        %v714 = vmax.f32 %v712, %v713
        %v715 = vrot.slane %v714, 2
        %v716 = vmax.f32 %v714, %v715
        %v717 = vrot.slane %v716, 1
        %v718 = vmax.f32 %v716, %v717
        %v719 = vmax.f32 %v446, %v456
        %v720 = vmax.f32 %v450, %v460
        %v721 = vmax.f32 %v719, %v466
        %v722 = vmax.f32 %v720, %v470
        %v723 = vmax.f32 %v721, %v476
        %v724 = vmax.f32 %v722, %v480
        %v725 = vmax.f32 %v723, %v486
        %v726 = vmax.f32 %v724, %v490
        %v727 = vmax.f32 %v725, %v496
        %v728 = vmax.f32 %v726, %v500
        %v729 = vmax.f32 %v727, %v506
        %v730 = vmax.f32 %v728, %v510
        %v731 = vmax.f32 %v729, %v516
        %v732 = vmax.f32 %v730, %v520
        %v733 = vmax.f32 %v731, %v732
        %v734 = vrot.slane %v733, 4
        %v735 = vmax.f32 %v733, %v734
        %v736 = vrot.slane %v735, 2
        %v737 = vmax.f32 %v735, %v736
        %v738 = vrot.slane %v737, 1
        %v739 = vmax.f32 %v737, %v738
        %v740 = vsub.f32 %v444, %v718
        %v741 = vsub.f32 %v446, %v739
        %v742 = vsub.f32 %v448, %v718
        %v743 = vsub.f32 %v450, %v739
        %v744 = vsub.f32 %v454, %v718
        %v745 = vsub.f32 %v456, %v739
        %v746 = vsub.f32 %v458, %v718
        %v747 = vsub.f32 %v460, %v739
        %v748 = vsub.f32 %v464, %v718
        %v749 = vsub.f32 %v466, %v739
        %v750 = vsub.f32 %v468, %v718
        %v751 = vsub.f32 %v470, %v739
        %v752 = vsub.f32 %v474, %v718
        %v753 = vsub.f32 %v476, %v739
        %v754 = vsub.f32 %v478, %v718
        %v755 = vsub.f32 %v480, %v739
        %v756 = vsub.f32 %v484, %v718
        %v757 = vsub.f32 %v486, %v739
        %v758 = vsub.f32 %v488, %v718
        %v759 = vsub.f32 %v490, %v739
        %v760 = vsub.f32 %v494, %v718
        %v761 = vsub.f32 %v496, %v739
        %v762 = vsub.f32 %v498, %v718
        %v763 = vsub.f32 %v500, %v739
        %v764 = vsub.f32 %v504, %v718
        %v765 = vsub.f32 %v506, %v739
        %v766 = vsub.f32 %v508, %v718
        %v767 = vsub.f32 %v510, %v739
        %v768 = vsub.f32 %v514, %v718
        %v769 = vsub.f32 %v516, %v739
        %v770 = vsub.f32 %v518, %v718
        %v771 = vsub.f32 %v520, %v739
        %v772 = vmul.f32 %v740, 1.442695
        %v773 = vpow.pop %v772
        %v774 = vmul.f32 %v741, 1.442695
        %v775 = vpow.pop %v774
        %v776 = vmul.f32 %v742, 1.442695
        %v777 = vpow.pop %v776
        %v778 = vmul.f32 %v743, 1.442695
        %v779 = vpow.pop %v778
        %v780 = vmul.f32 %v744, 1.442695
        %v781 = vpow.pop %v780
        %v782 = vmul.f32 %v745, 1.442695
        %v783 = vpow.pop %v782
        %v784 = vmul.f32 %v746, 1.442695
        %v785 = vpow.pop %v784
        %v786 = vmul.f32 %v747, 1.442695
        %v787 = vpow.pop %v786
        %v788 = vmul.f32 %v748, 1.442695
        %v789 = vpow.pop %v788
        %v790 = vmul.f32 %v749, 1.442695
        %v791 = vpow.pop %v790
        %v792 = vmul.f32 %v750, 1.442695
        %v793 = vpow.pop %v792
        %v794 = vmul.f32 %v751, 1.442695
        %v795 = vpow.pop %v794
        %v796 = vmul.f32 %v752, 1.442695
        %v797 = vpow.pop %v796
        %v798 = vmul.f32 %v753, 1.442695
        %v799 = vpow.pop %v798
        %v800 = vmul.f32 %v754, 1.442695
        %v801 = vpow.pop %v800
        %v802 = vmul.f32 %v755, 1.442695
        %v803 = vpow.pop %v802
        %v804 = vmul.f32 %v756, 1.442695
        %v805 = vpow.pop %v804
        %v806 = vmul.f32 %v757, 1.442695
        %v807 = vpow.pop %v806
        %v808 = vmul.f32 %v758, 1.442695
        %v809 = vpow.pop %v808
        %v810 = vmul.f32 %v759, 1.442695
        %v811 = vpow.pop %v810
        %v812 = vmul.f32 %v760, 1.442695
        %v813 = vpow.pop %v812
        %v814 = vmul.f32 %v761, 1.442695
        %v815 = vpow.pop %v814
        %v816 = vmul.f32 %v762, 1.442695
        %v817 = vpow.pop %v816
        %v818 = vmul.f32 %v763, 1.442695
        %v819 = vpow.pop %v818
        %v820 = vmul.f32 %v764, 1.442695
        %v821 = vpow.pop %v820
        %v822 = vmul.f32 %v765, 1.442695
        %v823 = vpow.pop %v822
        %v824 = vmul.f32 %v766, 1.442695
        %v825 = vpow.pop %v824
        %v826 = vmul.f32 %v767, 1.442695
        %v827 = vpow.pop %v826
        %v828 = vmul.f32 %v768, 1.442695
        %v829 = vpow.pop %v828
        %v830 = vmul.f32 %v769, 1.442695
        %v831 = vpow.pop %v830
        %v832 = vmul.f32 %v770, 1.442695
        %v833 = vpow.pop %v832
        %v834 = vmul.f32 %v771, 1.442695
        %v835 = vpow.pop %v834
        %v836 = vpack.c.bf16 %v683, %v682
        %v837 = vpack.c.bf16 %v685, %v684
        %v838 = vpack.c.bf16 %v687, %v686
        %v839 = vpack.c.bf16 %v689, %v688
        %v840 = vpack.c.bf16 %v691, %v690
        %v841 = vpack.c.bf16 %v693, %v692
        %v842 = vpack.c.bf16 %v695, %v694
        %v843 = vpack.c.bf16 %v697, %v696
        %v844 = vpack.c.bf16 %v777, %v773
        %v845 = vpack.c.bf16 %v779, %v775
        %v846 = vpack.c.bf16 %v785, %v781
        %v847 = vpack.c.bf16 %v787, %v783
        %v848 = vpack.c.bf16 %v793, %v789
        %v849 = vpack.c.bf16 %v795, %v791
        %v850 = vpack.c.bf16 %v801, %v797
        %v851 = vpack.c.bf16 %v803, %v799
        %v852 = vpack.c.bf16 %v809, %v805
        %v853 = vpack.c.bf16 %v811, %v807
        %v854 = vpack.c.bf16 %v817, %v813
        %v855 = vpack.c.bf16 %v819, %v815
        %v856 = vpack.c.bf16 %v825, %v821
        %v857 = vpack.c.bf16 %v827, %v823
        %v858 = vpack.c.bf16 %v833, %v829
        %v859 = vpack.c.bf16 %v835, %v831
        %860 = vmatprep.subr.bf16.mxu0 %v859
        %861 = vmatpush1.bf16.msra.mxu0 %v858
        %862 = vmatprep.subr.bf16.mxu0 %v857
        %863 = vmatpush1.bf16.msra.mxu0 %v856
        %864 = vmatprep.subr.bf16.mxu0 %v855
        %865 = vmatpush1.bf16.msra.mxu0 %v854
        %866 = vmatprep.subr.bf16.mxu0 %v853
        %867 = vmatpush1.bf16.msra.mxu0 %v852
        %868 = vmatprep.subr.bf16.mxu0 %v851
        %869 = vmatpush1.bf16.msra.mxu0 %v850
        %870 = vmatprep.subr.bf16.mxu0 %v849
        %871 = vmatpush1.bf16.msra.mxu0 %v848
        %872 = vmatprep.subr.bf16.mxu0 %v847
        %873 = vmatpush1.bf16.msra.mxu0 %v846
        %874 = vmatprep.subr.bf16.mxu0 %v845
        %875 = vmatpush1.bf16.msra.mxu0 %v844
        %876 = vmatprep.subr.bf16.mxu0 0
        %877 = vmatpush2.bf16.msra.mxu0 0
        %878 = vmatprep.subr.bf16.mxu0 0
        %879 = vmatpush2.bf16.msra.mxu0 0
        %880 = vmatprep.subr.bf16.mxu0 0
        %881 = vmatpush2.bf16.msra.mxu0 0
        %882 = vmatprep.subr.bf16.mxu0 0
        %883 = vmatpush2.bf16.msra.mxu0 0
        %884 = vmatprep.subr.bf16.mxu0 0
        %885 = vmatpush2.bf16.msra.mxu0 0
        %886 = vmatprep.subr.bf16.mxu0 0
        %887 = vmatpush2.bf16.msra.mxu0 0
        %888 = vmatprep.subr.bf16.mxu0 0
        %889 = vmatpush2.bf16.msra.mxu0 0
        %890 = vmatprep.subr.bf16.mxu0 0
        %891 = vmatpush2.bf16.msra.mxu0 0
        %892 = vmatprep.mubr.bf16.mxu0 0
        %893 = vmatmul.mubr.bf16.gmra.mxu0 %v836
        %v894 = vpop.f32.mrf.mxu0
        %v895 = vadd.f32 0.0, %v894
        %v896 = vpop.f32.mrf.mxu0
        %v897 = vadd.f32 0.0, %v896
        %v898 = vpop.f32.mrf.mxu0
        %v899 = vadd.f32 0.0, %v898
        %v900 = vpop.f32.mrf.mxu0
        %v901 = vadd.f32 0.0, %v900
        %902 = vmatprep.mubr.bf16.mxu0 0
        %903 = vmatmul.mubr.bf16.gmra.mxu0 %v837
        %v904 = vpop.f32.mrf.mxu0
        %v905 = vadd.f32 0.0, %v904
        %v906 = vpop.f32.mrf.mxu0
        %v907 = vadd.f32 0.0, %v906
        %v908 = vpop.f32.mrf.mxu0
        %v909 = vadd.f32 0.0, %v908
        %v910 = vpop.f32.mrf.mxu0
        %v911 = vadd.f32 0.0, %v910
        %912 = vmatprep.mubr.bf16.mxu0 0
        %913 = vmatmul.mubr.bf16.gmra.mxu0 %v838
        %v914 = vpop.f32.mrf.mxu0
        %v915 = vadd.f32 0.0, %v914
        %v916 = vpop.f32.mrf.mxu0
        %v917 = vadd.f32 0.0, %v916
        %v918 = vpop.f32.mrf.mxu0
        %v919 = vadd.f32 0.0, %v918
        %v920 = vpop.f32.mrf.mxu0
        %v921 = vadd.f32 0.0, %v920
        %922 = vmatprep.mubr.bf16.mxu0 0
        %923 = vmatmul.mubr.bf16.gmra.mxu0 %v839
        %v924 = vpop.f32.mrf.mxu0
        %v925 = vadd.f32 0.0, %v924
        %v926 = vpop.f32.mrf.mxu0
        %v927 = vadd.f32 0.0, %v926
        %v928 = vpop.f32.mrf.mxu0
        %v929 = vadd.f32 0.0, %v928
        %v930 = vpop.f32.mrf.mxu0
        %v931 = vadd.f32 0.0, %v930
        %932 = vmatprep.mubr.bf16.mxu0 0
        %933 = vmatmul.mubr.bf16.gmra.mxu0 %v840
        %v934 = vpop.f32.mrf.mxu0
        %v935 = vadd.f32 0.0, %v934
        %v936 = vpop.f32.mrf.mxu0
        %v937 = vadd.f32 0.0, %v936
        %v938 = vpop.f32.mrf.mxu0
        %v939 = vadd.f32 0.0, %v938
        %v940 = vpop.f32.mrf.mxu0
        %v941 = vadd.f32 0.0, %v940
        %942 = vmatprep.mubr.bf16.mxu0 0
        %943 = vmatmul.mubr.bf16.gmra.mxu0 %v841
        %v944 = vpop.f32.mrf.mxu0
        %v945 = vadd.f32 0.0, %v944
        %v946 = vpop.f32.mrf.mxu0
        %v947 = vadd.f32 0.0, %v946
        %v948 = vpop.f32.mrf.mxu0
        %v949 = vadd.f32 0.0, %v948
        %v950 = vpop.f32.mrf.mxu0
        %v951 = vadd.f32 0.0, %v950
        %952 = vmatprep.mubr.bf16.mxu0 0
        %953 = vmatmul.mubr.bf16.gmra.mxu0 %v842
        %v954 = vpop.f32.mrf.mxu0
        %v955 = vadd.f32 0.0, %v954
        %v956 = vpop.f32.mrf.mxu0
        %v957 = vadd.f32 0.0, %v956
        %v958 = vpop.f32.mrf.mxu0
        %v959 = vadd.f32 0.0, %v958
        %v960 = vpop.f32.mrf.mxu0
        %v961 = vadd.f32 0.0, %v960
        %962 = vmatprep.mubr.bf16.mxu0 0
        %963 = vmatmul.mubr.bf16.gmra.mxu0 %v843
        %v964 = vpop.f32.mrf.mxu0
        %v965 = vadd.f32 0.0, %v964
        %v966 = vpop.f32.mrf.mxu0
        %v967 = vadd.f32 0.0, %v966
        %v968 = vpop.f32.mrf.mxu0
        %v969 = vadd.f32 0.0, %v968
        %v970 = vpop.f32.mrf.mxu0
        %v971 = vadd.f32 0.0, %v970
        %972 = vdwg.mxu0
        %v973 = vrcp.pop %v895
        %v974 = vrcp.pop %v897
        %v975 = vrcp.pop %v899
        %v976 = vrcp.pop %v901
        %v977 = vrcp.pop %v905
        %v978 = vrcp.pop %v907
        %v979 = vrcp.pop %v909
        %v980 = vrcp.pop %v911
        %v981 = vrcp.pop %v915
        %v982 = vrcp.pop %v917
        %v983 = vrcp.pop %v919
        %v984 = vrcp.pop %v921
        %v985 = vrcp.pop %v925
        %v986 = vrcp.pop %v927
        %v987 = vrcp.pop %v929
        %v988 = vrcp.pop %v931
        %v989 = vrcp.pop %v935
        %v990 = vrcp.pop %v937
        %v991 = vrcp.pop %v939
        %v992 = vrcp.pop %v941
        %v993 = vrcp.pop %v945
        %v994 = vrcp.pop %v947
        %v995 = vrcp.pop %v949
        %v996 = vrcp.pop %v951
        %v997 = vrcp.pop %v955
        %v998 = vrcp.pop %v957
        %v999 = vrcp.pop %v959
        %v1000 = vrcp.pop %v961
        %v1001 = vrcp.pop %v965
        %v1002 = vrcp.pop %v967
        %v1003 = vrcp.pop %v969
        %v1004 = vrcp.pop %v971
        %v1005 = vmul.f32 %v773, %v973
        %v1006 = vmul.f32 %v775, %v974
        %v1007 = vmul.f32 %v777, %v975
        %v1008 = vmul.f32 %v779, %v976
        %v1009 = vmul.f32 %v781, %v977
        %v1010 = vmul.f32 %v783, %v978
        %v1011 = vmul.f32 %v785, %v979
        %v1012 = vmul.f32 %v787, %v980
        %v1013 = vmul.f32 %v789, %v981
        %v1014 = vmul.f32 %v791, %v982
        %v1015 = vmul.f32 %v793, %v983
        %v1016 = vmul.f32 %v795, %v984
        %v1017 = vmul.f32 %v797, %v985
        %v1018 = vmul.f32 %v799, %v986
        %v1019 = vmul.f32 %v801, %v987
        %v1020 = vmul.f32 %v803, %v988
        %v1021 = vmul.f32 %v805, %v989
        %v1022 = vmul.f32 %v807, %v990
        %v1023 = vmul.f32 %v809, %v991
        %v1024 = vmul.f32 %v811, %v992
        %v1025 = vmul.f32 %v813, %v993
        %v1026 = vmul.f32 %v815, %v994
        %v1027 = vmul.f32 %v817, %v995
        %v1028 = vmul.f32 %v819, %v996
        %v1029 = vmul.f32 %v821, %v997
        %v1030 = vmul.f32 %v823, %v998
        %v1031 = vmul.f32 %v825, %v999
        %v1032 = vmul.f32 %v827, %v1000
        %v1033 = vmul.f32 %v829, %v1001
        %v1034 = vmul.f32 %v831, %v1002
        %v1035 = vmul.f32 %v833, %v1003
        %v1036 = vmul.f32 %v835, %v1004
        %v1037 = vmax.f32 %v524, %v526
        %1038 = vmax.xlane.f32.xlu0 %v1037
        %v1039 = vpop.xlane.xlu0 %1038
        %v1040 = vmax.f32 %v528, %v530
        %1041 = vmax.xlane.f32.xlu0 %v1040
        %v1042 = vpop.xlane.xlu0 %1041
        %v1043 = vmax.f32 %v534, %v536
        %1044 = vmax.xlane.f32.xlu0 %v1043
        %v1045 = vpop.xlane.xlu0 %1044
        %v1046 = vmax.f32 %v538, %v540
        %1047 = vmax.xlane.f32.xlu0 %v1046
        %v1048 = vpop.xlane.xlu0 %1047
        %v1049 = vmax.f32 %v544, %v546
        %1050 = vmax.xlane.f32.xlu0 %v1049
        %v1051 = vpop.xlane.xlu0 %1050
        %v1052 = vmax.f32 %v548, %v550
        %1053 = vmax.xlane.f32.xlu0 %v1052
        %v1054 = vpop.xlane.xlu0 %1053
        %v1055 = vmax.f32 %v554, %v556
        %1056 = vmax.xlane.f32.xlu0 %v1055
        %v1057 = vpop.xlane.xlu0 %1056
        %v1058 = vmax.f32 %v558, %v560
        %1059 = vmax.xlane.f32.xlu0 %v1058
        %v1060 = vpop.xlane.xlu0 %1059
        %v1061 = vmax.f32 %v564, %v566
        %1062 = vmax.xlane.f32.xlu0 %v1061
        %v1063 = vpop.xlane.xlu0 %1062
        %v1064 = vmax.f32 %v568, %v570
        %1065 = vmax.xlane.f32.xlu0 %v1064
        %v1066 = vpop.xlane.xlu0 %1065
        %v1067 = vmax.f32 %v574, %v576
        %1068 = vmax.xlane.f32.xlu0 %v1067
        %v1069 = vpop.xlane.xlu0 %1068
        %v1070 = vmax.f32 %v578, %v580
        %1071 = vmax.xlane.f32.xlu0 %v1070
        %v1072 = vpop.xlane.xlu0 %1071
        %v1073 = vmax.f32 %v584, %v586
        %1074 = vmax.xlane.f32.xlu0 %v1073
        %v1075 = vpop.xlane.xlu0 %1074
        %v1076 = vmax.f32 %v588, %v590
        %1077 = vmax.xlane.f32.xlu0 %v1076
        %v1078 = vpop.xlane.xlu0 %1077
        %v1079 = vmax.f32 %v594, %v596
        %1080 = vmax.xlane.f32.xlu0 %v1079
        %v1081 = vpop.xlane.xlu0 %1080
        %v1082 = vmax.f32 %v598, %v600
        %1083 = vmax.xlane.f32.xlu0 %v1082
        %v1084 = vpop.xlane.xlu0 %1083
        %v1085 = vsub.f32 %v524, %v1039
        %v1086 = vsub.f32 %v526, %v1039
        %v1087 = vsub.f32 %v528, %v1042
        %v1088 = vsub.f32 %v530, %v1042
        %v1089 = vsub.f32 %v534, %v1045
        %v1090 = vsub.f32 %v536, %v1045
        %v1091 = vsub.f32 %v538, %v1048
        %v1092 = vsub.f32 %v540, %v1048
        %v1093 = vsub.f32 %v544, %v1051
        %v1094 = vsub.f32 %v546, %v1051
        %v1095 = vsub.f32 %v548, %v1054
        %v1096 = vsub.f32 %v550, %v1054
        %v1097 = vsub.f32 %v554, %v1057
        %v1098 = vsub.f32 %v556, %v1057
        %v1099 = vsub.f32 %v558, %v1060
        %v1100 = vsub.f32 %v560, %v1060
        %v1101 = vsub.f32 %v564, %v1063
        %v1102 = vsub.f32 %v566, %v1063
        %v1103 = vsub.f32 %v568, %v1066
        %v1104 = vsub.f32 %v570, %v1066
        %v1105 = vsub.f32 %v574, %v1069
        %v1106 = vsub.f32 %v576, %v1069
        %v1107 = vsub.f32 %v578, %v1072
        %v1108 = vsub.f32 %v580, %v1072
        %v1109 = vsub.f32 %v584, %v1075
        %v1110 = vsub.f32 %v586, %v1075
        %v1111 = vsub.f32 %v588, %v1078
        %v1112 = vsub.f32 %v590, %v1078
        %v1113 = vsub.f32 %v594, %v1081
        %v1114 = vsub.f32 %v596, %v1081
        %v1115 = vsub.f32 %v598, %v1084
        %v1116 = vsub.f32 %v600, %v1084
        %v1117 = vmul.f32 %v1085, 1.442695
        %v1118 = vpow.pop %v1117
        %v1119 = vmul.f32 %v1086, 1.442695
        %v1120 = vpow.pop %v1119
        %v1121 = vmul.f32 %v1087, 1.442695
        %v1122 = vpow.pop %v1121
        %v1123 = vmul.f32 %v1088, 1.442695
        %v1124 = vpow.pop %v1123
        %v1125 = vmul.f32 %v1089, 1.442695
        %v1126 = vpow.pop %v1125
        %v1127 = vmul.f32 %v1090, 1.442695
        %v1128 = vpow.pop %v1127
        %v1129 = vmul.f32 %v1091, 1.442695
        %v1130 = vpow.pop %v1129
        %v1131 = vmul.f32 %v1092, 1.442695
        %v1132 = vpow.pop %v1131
        %v1133 = vmul.f32 %v1093, 1.442695
        %v1134 = vpow.pop %v1133
        %v1135 = vmul.f32 %v1094, 1.442695
        %v1136 = vpow.pop %v1135
        %v1137 = vmul.f32 %v1095, 1.442695
        %v1138 = vpow.pop %v1137
        %v1139 = vmul.f32 %v1096, 1.442695
        %v1140 = vpow.pop %v1139
        %v1141 = vmul.f32 %v1097, 1.442695
        %v1142 = vpow.pop %v1141
        %v1143 = vmul.f32 %v1098, 1.442695
        %v1144 = vpow.pop %v1143
        %v1145 = vmul.f32 %v1099, 1.442695
        %v1146 = vpow.pop %v1145
        %v1147 = vmul.f32 %v1100, 1.442695
        %v1148 = vpow.pop %v1147
        %v1149 = vmul.f32 %v1101, 1.442695
        %v1150 = vpow.pop %v1149
        %v1151 = vmul.f32 %v1102, 1.442695
        %v1152 = vpow.pop %v1151
        %v1153 = vmul.f32 %v1103, 1.442695
        %v1154 = vpow.pop %v1153
        %v1155 = vmul.f32 %v1104, 1.442695
        %v1156 = vpow.pop %v1155
        %v1157 = vmul.f32 %v1105, 1.442695
        %v1158 = vpow.pop %v1157
        %v1159 = vmul.f32 %v1106, 1.442695
        %v1160 = vpow.pop %v1159
        %v1161 = vmul.f32 %v1107, 1.442695
        %v1162 = vpow.pop %v1161
        %v1163 = vmul.f32 %v1108, 1.442695
        %v1164 = vpow.pop %v1163
        %v1165 = vmul.f32 %v1109, 1.442695
        %v1166 = vpow.pop %v1165
        %v1167 = vmul.f32 %v1110, 1.442695
        %v1168 = vpow.pop %v1167
        %v1169 = vmul.f32 %v1111, 1.442695
        %v1170 = vpow.pop %v1169
        %v1171 = vmul.f32 %v1112, 1.442695
        %v1172 = vpow.pop %v1171
        %v1173 = vmul.f32 %v1113, 1.442695
        %v1174 = vpow.pop %v1173
        %v1175 = vmul.f32 %v1114, 1.442695
        %v1176 = vpow.pop %v1175
        %v1177 = vmul.f32 %v1115, 1.442695
        %v1178 = vpow.pop %v1177
        %v1179 = vmul.f32 %v1116, 1.442695
        %v1180 = vpow.pop %v1179
        %v1181 = vadd.f32 %v1118, %v1120
        %1182 = vadd.xlane.f32.xlu0 %v1181
        %v1183 = vpop.xlane.xlu0 %1182
        %v1184 = vadd.f32 %v1122, %v1124
        %1185 = vadd.xlane.f32.xlu0 %v1184
        %v1186 = vpop.xlane.xlu0 %1185
        %v1187 = vadd.f32 %v1126, %v1128
        %1188 = vadd.xlane.f32.xlu0 %v1187
        %v1189 = vpop.xlane.xlu0 %1188
        %v1190 = vadd.f32 %v1130, %v1132
        %1191 = vadd.xlane.f32.xlu0 %v1190
        %v1192 = vpop.xlane.xlu0 %1191
        %v1193 = vadd.f32 %v1134, %v1136
        %1194 = vadd.xlane.f32.xlu0 %v1193
        %v1195 = vpop.xlane.xlu0 %1194
        %v1196 = vadd.f32 %v1138, %v1140
        %1197 = vadd.xlane.f32.xlu0 %v1196
        %v1198 = vpop.xlane.xlu0 %1197
        %v1199 = vadd.f32 %v1142, %v1144
        %1200 = vadd.xlane.f32.xlu0 %v1199
        %v1201 = vpop.xlane.xlu0 %1200
        %v1202 = vadd.f32 %v1146, %v1148
        %1203 = vadd.xlane.f32.xlu0 %v1202
        %v1204 = vpop.xlane.xlu0 %1203
        %v1205 = vadd.f32 %v1150, %v1152
        %1206 = vadd.xlane.f32.xlu0 %v1205
        %v1207 = vpop.xlane.xlu0 %1206
        %v1208 = vadd.f32 %v1154, %v1156
        %1209 = vadd.xlane.f32.xlu0 %v1208
        %v1210 = vpop.xlane.xlu0 %1209
        %v1211 = vadd.f32 %v1158, %v1160
        %1212 = vadd.xlane.f32.xlu0 %v1211
        %v1213 = vpop.xlane.xlu0 %1212
        %v1214 = vadd.f32 %v1162, %v1164
        %1215 = vadd.xlane.f32.xlu0 %v1214
        %v1216 = vpop.xlane.xlu0 %1215
        %v1217 = vadd.f32 %v1166, %v1168
        %1218 = vadd.xlane.f32.xlu0 %v1217
        %v1219 = vpop.xlane.xlu0 %1218
        %v1220 = vadd.f32 %v1170, %v1172
        %1221 = vadd.xlane.f32.xlu0 %v1220
        %v1222 = vpop.xlane.xlu0 %1221
        %v1223 = vadd.f32 %v1174, %v1176
        %1224 = vadd.xlane.f32.xlu0 %v1223
        %v1225 = vpop.xlane.xlu0 %1224
        %v1226 = vadd.f32 %v1178, %v1180
        %1227 = vadd.xlane.f32.xlu0 %v1226
        %v1228 = vpop.xlane.xlu0 %1227
        %v1229 = vrcp.pop %v1183
        %v1230 = vrcp.pop %v1186
        %v1231 = vrcp.pop %v1189
        %v1232 = vrcp.pop %v1192
        %v1233 = vrcp.pop %v1195
        %v1234 = vrcp.pop %v1198
        %v1235 = vrcp.pop %v1201
        %v1236 = vrcp.pop %v1204
        %v1237 = vrcp.pop %v1207
        %v1238 = vrcp.pop %v1210
        %v1239 = vrcp.pop %v1213
        %v1240 = vrcp.pop %v1216
        %v1241 = vrcp.pop %v1219
        %v1242 = vrcp.pop %v1222
        %v1243 = vrcp.pop %v1225
        %v1244 = vrcp.pop %v1228
        %v1245 = vmul.f32 %v1118, %v1229
        %v1246 = vmul.f32 %v1120, %v1229
        %v1247 = vmul.f32 %v1122, %v1230
        %v1248 = vmul.f32 %v1124, %v1230
        %v1249 = vmul.f32 %v1126, %v1231
        %v1250 = vmul.f32 %v1128, %v1231
        %v1251 = vmul.f32 %v1130, %v1232
        %v1252 = vmul.f32 %v1132, %v1232
        %v1253 = vmul.f32 %v1134, %v1233
        %v1254 = vmul.f32 %v1136, %v1233
        %v1255 = vmul.f32 %v1138, %v1234
        %v1256 = vmul.f32 %v1140, %v1234
        %v1257 = vmul.f32 %v1142, %v1235
        %v1258 = vmul.f32 %v1144, %v1235
        %v1259 = vmul.f32 %v1146, %v1236
        %v1260 = vmul.f32 %v1148, %v1236
        %v1261 = vmul.f32 %v1150, %v1237
        %v1262 = vmul.f32 %v1152, %v1237
        %v1263 = vmul.f32 %v1154, %v1238
        %v1264 = vmul.f32 %v1156, %v1238
        %v1265 = vmul.f32 %v1158, %v1239
        %v1266 = vmul.f32 %v1160, %v1239
        %v1267 = vmul.f32 %v1162, %v1240
        %v1268 = vmul.f32 %v1164, %v1240
        %v1269 = vmul.f32 %v1166, %v1241
        %v1270 = vmul.f32 %v1168, %v1241
        %v1271 = vmul.f32 %v1170, %v1242
        %v1272 = vmul.f32 %v1172, %v1242
        %v1273 = vmul.f32 %v1174, %v1243
        %v1274 = vmul.f32 %v1176, %v1243
        %v1275 = vmul.f32 %v1178, %v1244
        %v1276 = vmul.f32 %v1180, %v1244
        %v1277 = vpack.c.bf16 %v608, %v604
        %v1278 = vpack.c.bf16 %v610, %v606
        %v1279 = vpack.c.bf16 %v618, %v614
        %v1280 = vpack.c.bf16 %v620, %v616
        %v1281 = vpack.c.bf16 %v628, %v624
        %v1282 = vpack.c.bf16 %v630, %v626
        %v1283 = vpack.c.bf16 %v638, %v634
        %v1284 = vpack.c.bf16 %v640, %v636
        %v1285 = vpack.c.bf16 %v648, %v644
        %v1286 = vpack.c.bf16 %v650, %v646
        %v1287 = vpack.c.bf16 %v658, %v654
        %v1288 = vpack.c.bf16 %v660, %v656
        %v1289 = vpack.c.bf16 %v668, %v664
        %v1290 = vpack.c.bf16 %v670, %v666
        %v1291 = vpack.c.bf16 %v678, %v674
        %v1292 = vpack.c.bf16 %v680, %v676
        %v1293 = vpack.c.bf16 %v1247, %v1245
        %v1294 = vpack.c.bf16 %v1248, %v1246
        %v1295 = vpack.c.bf16 %v1251, %v1249
        %v1296 = vpack.c.bf16 %v1252, %v1250
        %v1297 = vpack.c.bf16 %v1255, %v1253
        %v1298 = vpack.c.bf16 %v1256, %v1254
        %v1299 = vpack.c.bf16 %v1259, %v1257
        %v1300 = vpack.c.bf16 %v1260, %v1258
        %v1301 = vpack.c.bf16 %v1263, %v1261
        %v1302 = vpack.c.bf16 %v1264, %v1262
        %v1303 = vpack.c.bf16 %v1267, %v1265
        %v1304 = vpack.c.bf16 %v1268, %v1266
        %v1305 = vpack.c.bf16 %v1271, %v1269
        %v1306 = vpack.c.bf16 %v1272, %v1270
        %v1307 = vpack.c.bf16 %v1275, %v1273
        %v1308 = vpack.c.bf16 %v1276, %v1274
        %1309 = vmatprep.subr.bf16.mxu0 %v1308
        %1310 = vmatpush1.bf16.xpose.msra.mxu0 %v1307
        %1311 = vmatprep.subr.bf16.mxu0 %v1306
        %1312 = vmatpush1.bf16.xpose.msra.mxu0 %v1305
        %1313 = vmatprep.subr.bf16.mxu0 %v1304
        %1314 = vmatpush1.bf16.xpose.msra.mxu0 %v1303
        %1315 = vmatprep.subr.bf16.mxu0 %v1302
        %1316 = vmatpush1.bf16.xpose.msra.mxu0 %v1301
        %1317 = vmatprep.subr.bf16.mxu0 %v1300
        %1318 = vmatpush1.bf16.xpose.msra.mxu0 %v1299
        %1319 = vmatprep.subr.bf16.mxu0 %v1298
        %1320 = vmatpush1.bf16.xpose.msra.mxu0 %v1297
        %1321 = vmatprep.subr.bf16.mxu0 %v1296
        %1322 = vmatpush1.bf16.xpose.msra.mxu0 %v1295
        %1323 = vmatprep.subr.bf16.mxu0 %v1294
        %1324 = vmatpush1.bf16.xpose.msra.mxu0 %v1293
        %1325 = vmatprep.subr.bf16.mxu0 0
        %1326 = vmatpush2.bf16.xpose.msra.mxu0 0
        %1327 = vmatprep.subr.bf16.mxu0 0
        %1328 = vmatpush2.bf16.xpose.msra.mxu0 0
        %1329 = vmatprep.subr.bf16.mxu0 0
        %1330 = vmatpush2.bf16.xpose.msra.mxu0 0
        %1331 = vmatprep.subr.bf16.mxu0 0
        %1332 = vmatpush2.bf16.xpose.msra.mxu0 0
        %1333 = vmatprep.subr.bf16.mxu0 0
        %1334 = vmatpush2.bf16.xpose.msra.mxu0 0
        %1335 = vmatprep.subr.bf16.mxu0 0
        %1336 = vmatpush2.bf16.xpose.msra.mxu0 0
        %1337 = vmatprep.subr.bf16.mxu0 0
        %1338 = vmatpush2.bf16.xpose.msra.mxu0 0
        %1339 = vmatprep.subr.bf16.mxu0 0
        %1340 = vmatpush2.bf16.xpose.msra.mxu0 0
        %1341 = vmatprep.mubr.bf16.mxu0 %v1278
        %1342 = vmatmul.mubr.bf16.gmra.mxu0 %v1277
        %v1343 = vpop.f32.mrf.mxu0
        %v1344 = vadd.f32 0.0, %v1343
        %v1345 = vpop.f32.mrf.mxu0
        %v1346 = vpop.f32.mrf.mxu0
        %v1347 = vadd.f32 0.0, %v1346
        %v1348 = vpop.f32.mrf.mxu0
        %1349 = vmatprep.mubr.bf16.mxu0 %v1280
        %1350 = vmatmul.mubr.bf16.gmra.mxu0 %v1279
        %v1351 = vpop.f32.mrf.mxu0
        %v1352 = vadd.f32 0.0, %v1351
        %v1353 = vpop.f32.mrf.mxu0
        %v1354 = vpop.f32.mrf.mxu0
        %v1355 = vadd.f32 0.0, %v1354
        %v1356 = vpop.f32.mrf.mxu0
        %1357 = vmatprep.mubr.bf16.mxu0 %v1282
        %1358 = vmatmul.mubr.bf16.gmra.mxu0 %v1281
        %v1359 = vpop.f32.mrf.mxu0
        %v1360 = vadd.f32 0.0, %v1359
        %v1361 = vpop.f32.mrf.mxu0
        %v1362 = vpop.f32.mrf.mxu0
        %v1363 = vadd.f32 0.0, %v1362
        %v1364 = vpop.f32.mrf.mxu0
        %1365 = vmatprep.mubr.bf16.mxu0 %v1284
        %1366 = vmatmul.mubr.bf16.gmra.mxu0 %v1283
        %v1367 = vpop.f32.mrf.mxu0
        %v1368 = vadd.f32 0.0, %v1367
        %v1369 = vpop.f32.mrf.mxu0
        %v1370 = vpop.f32.mrf.mxu0
        %v1371 = vadd.f32 0.0, %v1370
        %v1372 = vpop.f32.mrf.mxu0
        %1373 = vmatprep.mubr.bf16.mxu0 %v1286
        %1374 = vmatmul.mubr.bf16.gmra.mxu0 %v1285
        %v1375 = vpop.f32.mrf.mxu0
        %v1376 = vadd.f32 0.0, %v1375
        %v1377 = vpop.f32.mrf.mxu0
        %v1378 = vpop.f32.mrf.mxu0
        %v1379 = vadd.f32 0.0, %v1378
        %v1380 = vpop.f32.mrf.mxu0
        %1381 = vmatprep.mubr.bf16.mxu0 %v1288
        %1382 = vmatmul.mubr.bf16.gmra.mxu0 %v1287
        %v1383 = vpop.f32.mrf.mxu0
        %v1384 = vadd.f32 0.0, %v1383
        %v1385 = vpop.f32.mrf.mxu0
        %v1386 = vpop.f32.mrf.mxu0
        %v1387 = vadd.f32 0.0, %v1386
        %v1388 = vpop.f32.mrf.mxu0
        %1389 = vmatprep.mubr.bf16.mxu0 %v1290
        %1390 = vmatmul.mubr.bf16.gmra.mxu0 %v1289
        %v1391 = vpop.f32.mrf.mxu0
        %v1392 = vadd.f32 0.0, %v1391
        %v1393 = vpop.f32.mrf.mxu0
        %v1394 = vpop.f32.mrf.mxu0
        %v1395 = vadd.f32 0.0, %v1394
        %v1396 = vpop.f32.mrf.mxu0
        %1397 = vmatprep.mubr.bf16.mxu0 %v1292
        %1398 = vmatmul.mubr.bf16.gmra.mxu0 %v1291
        %v1399 = vpop.f32.mrf.mxu0
        %v1400 = vadd.f32 0.0, %v1399
        %v1401 = vpop.f32.mrf.mxu0
        %v1402 = vpop.f32.mrf.mxu0
        %v1403 = vadd.f32 0.0, %v1402
        %v1404 = vpop.f32.mrf.mxu0
        %1405 = vdwg.mxu0
        %v1406 = vmul.f32 %v1344, %v682
        %v1407 = vmul.f32 %v1347, %v683
        %v1408 = vmul.f32 %v1352, %v684
        %v1409 = vmul.f32 %v1355, %v685
        %v1410 = vmul.f32 %v1360, %v686
        %v1411 = vmul.f32 %v1363, %v687
        %v1412 = vmul.f32 %v1368, %v688
        %v1413 = vmul.f32 %v1371, %v689
        %v1414 = vmul.f32 %v1376, %v690
        %v1415 = vmul.f32 %v1379, %v691
        %v1416 = vmul.f32 %v1384, %v692
        %v1417 = vmul.f32 %v1387, %v693
        %v1418 = vmul.f32 %v1392, %v694
        %v1419 = vmul.f32 %v1395, %v695
        %v1420 = vmul.f32 %v1400, %v696
        %v1421 = vmul.f32 %v1403, %v697
        %v1422 = vpack.c.bf16 %v1407, %v1406
        %v1423 = vpack.c.bf16 %v1409, %v1408
        %v1424 = vpack.c.bf16 %v1411, %v1410
        %v1425 = vpack.c.bf16 %v1413, %v1412
        %v1426 = vpack.c.bf16 %v1415, %v1414
        %v1427 = vpack.c.bf16 %v1417, %v1416
        %v1428 = vpack.c.bf16 %v1419, %v1418
        %v1429 = vpack.c.bf16 %v1421, %v1420
        %v1430 = vpack.c.bf16 %v1007, %v1005
        %v1431 = vpack.c.bf16 %v1008, %v1006
        %v1432 = vpack.c.bf16 %v1011, %v1009
        %v1433 = vpack.c.bf16 %v1012, %v1010
        %v1434 = vpack.c.bf16 %v1015, %v1013
        %v1435 = vpack.c.bf16 %v1016, %v1014
        %v1436 = vpack.c.bf16 %v1019, %v1017
        %v1437 = vpack.c.bf16 %v1020, %v1018
        %v1438 = vpack.c.bf16 %v1023, %v1021
        %v1439 = vpack.c.bf16 %v1024, %v1022
        %v1440 = vpack.c.bf16 %v1027, %v1025
        %v1441 = vpack.c.bf16 %v1028, %v1026
        %v1442 = vpack.c.bf16 %v1031, %v1029
        %v1443 = vpack.c.bf16 %v1032, %v1030
        %v1444 = vpack.c.bf16 %v1035, %v1033
        %v1445 = vpack.c.bf16 %v1036, %v1034
        %1446 = vmatprep.subr.bf16.mxu0 %v1445
        %1447 = vmatpush1.bf16.msra.mxu0 %v1444
        %1448 = vmatprep.subr.bf16.mxu0 %v1443
        %1449 = vmatpush1.bf16.msra.mxu0 %v1442
        %1450 = vmatprep.subr.bf16.mxu0 %v1441
        %1451 = vmatpush1.bf16.msra.mxu0 %v1440
        %1452 = vmatprep.subr.bf16.mxu0 %v1439
        %1453 = vmatpush1.bf16.msra.mxu0 %v1438
        %1454 = vmatprep.subr.bf16.mxu0 %v1437
        %1455 = vmatpush1.bf16.msra.mxu0 %v1436
        %1456 = vmatprep.subr.bf16.mxu0 %v1435
        %1457 = vmatpush1.bf16.msra.mxu0 %v1434
        %1458 = vmatprep.subr.bf16.mxu0 %v1433
        %1459 = vmatpush1.bf16.msra.mxu0 %v1432
        %1460 = vmatprep.subr.bf16.mxu0 %v1431
        %1461 = vmatpush1.bf16.msra.mxu0 %v1430
        %1462 = vmatprep.subr.bf16.mxu0 0
        %1463 = vmatpush2.bf16.msra.mxu0 0
        %1464 = vmatprep.subr.bf16.mxu0 0
        %1465 = vmatpush2.bf16.msra.mxu0 0
        %1466 = vmatprep.subr.bf16.mxu0 0
        %1467 = vmatpush2.bf16.msra.mxu0 0
        %1468 = vmatprep.subr.bf16.mxu0 0
        %1469 = vmatpush2.bf16.msra.mxu0 0
        %1470 = vmatprep.subr.bf16.mxu0 0
        %1471 = vmatpush2.bf16.msra.mxu0 0
        %1472 = vmatprep.subr.bf16.mxu0 0
        %1473 = vmatpush2.bf16.msra.mxu0 0
        %1474 = vmatprep.subr.bf16.mxu0 0
        %1475 = vmatpush2.bf16.msra.mxu0 0
        %1476 = vmatprep.subr.bf16.mxu0 0
        %1477 = vmatpush2.bf16.msra.mxu0 0
        %1478 = vmatprep.mubr.bf16.mxu0 0
        %1479 = vmatmul.mubr.bf16.gmra.mxu0 %v1422
        %v1480 = vpop.f32.mrf.mxu0
        %v1481 = vadd.f32 0.0, %v1480
        %v1482 = vpop.f32.mrf.mxu0
        %v1483 = vadd.f32 0.0, %v1482
        %v1484 = vpop.f32.mrf.mxu0
        %v1485 = vadd.f32 0.0, %v1484
        %v1486 = vpop.f32.mrf.mxu0
        %v1487 = vadd.f32 0.0, %v1486
        %1488 = vmatprep.mubr.bf16.mxu0 0
        %1489 = vmatmul.mubr.bf16.gmra.mxu0 %v1423
        %v1490 = vpop.f32.mrf.mxu0
        %v1491 = vadd.f32 0.0, %v1490
        %v1492 = vpop.f32.mrf.mxu0
        %v1493 = vadd.f32 0.0, %v1492
        %v1494 = vpop.f32.mrf.mxu0
        %v1495 = vadd.f32 0.0, %v1494
        %v1496 = vpop.f32.mrf.mxu0
        %v1497 = vadd.f32 0.0, %v1496
        %1498 = vmatprep.mubr.bf16.mxu0 0
        %1499 = vmatmul.mubr.bf16.gmra.mxu0 %v1424
        %v1500 = vpop.f32.mrf.mxu0
        %v1501 = vadd.f32 0.0, %v1500
        %v1502 = vpop.f32.mrf.mxu0
        %v1503 = vadd.f32 0.0, %v1502
        %v1504 = vpop.f32.mrf.mxu0
        %v1505 = vadd.f32 0.0, %v1504
        %v1506 = vpop.f32.mrf.mxu0
        %v1507 = vadd.f32 0.0, %v1506
        %1508 = vmatprep.mubr.bf16.mxu0 0
        %1509 = vmatmul.mubr.bf16.gmra.mxu0 %v1425
        %v1510 = vpop.f32.mrf.mxu0
        %v1511 = vadd.f32 0.0, %v1510
        %v1512 = vpop.f32.mrf.mxu0
        %v1513 = vadd.f32 0.0, %v1512
        %v1514 = vpop.f32.mrf.mxu0
        %v1515 = vadd.f32 0.0, %v1514
        %v1516 = vpop.f32.mrf.mxu0
        %v1517 = vadd.f32 0.0, %v1516
        %1518 = vmatprep.mubr.bf16.mxu0 0
        %1519 = vmatmul.mubr.bf16.gmra.mxu0 %v1426
        %v1520 = vpop.f32.mrf.mxu0
        %v1521 = vadd.f32 0.0, %v1520
        %v1522 = vpop.f32.mrf.mxu0
        %v1523 = vadd.f32 0.0, %v1522
        %v1524 = vpop.f32.mrf.mxu0
        %v1525 = vadd.f32 0.0, %v1524
        %v1526 = vpop.f32.mrf.mxu0
        %v1527 = vadd.f32 0.0, %v1526
        %1528 = vmatprep.mubr.bf16.mxu0 0
        %1529 = vmatmul.mubr.bf16.gmra.mxu0 %v1427
        %v1530 = vpop.f32.mrf.mxu0
        %v1531 = vadd.f32 0.0, %v1530
        %v1532 = vpop.f32.mrf.mxu0
        %v1533 = vadd.f32 0.0, %v1532
        %v1534 = vpop.f32.mrf.mxu0
        %v1535 = vadd.f32 0.0, %v1534
        %v1536 = vpop.f32.mrf.mxu0
        %v1537 = vadd.f32 0.0, %v1536
        %1538 = vmatprep.mubr.bf16.mxu0 0
        %1539 = vmatmul.mubr.bf16.gmra.mxu0 %v1428
        %v1540 = vpop.f32.mrf.mxu0
        %v1541 = vadd.f32 0.0, %v1540
        %v1542 = vpop.f32.mrf.mxu0
        %v1543 = vadd.f32 0.0, %v1542
        %v1544 = vpop.f32.mrf.mxu0
        %v1545 = vadd.f32 0.0, %v1544
        %v1546 = vpop.f32.mrf.mxu0
        %v1547 = vadd.f32 0.0, %v1546
        %1548 = vmatprep.mubr.bf16.mxu0 0
        %1549 = vmatmul.mubr.bf16.gmra.mxu0 %v1429
        %v1550 = vpop.f32.mrf.mxu0
        %v1551 = vadd.f32 0.0, %v1550
        %v1552 = vpop.f32.mrf.mxu0
        %v1553 = vadd.f32 0.0, %v1552
        %v1554 = vpop.f32.mrf.mxu0
        %v1555 = vadd.f32 0.0, %v1554
        %v1556 = vpop.f32.mrf.mxu0
        %v1557 = vadd.f32 0.0, %v1556
        %1558 = vdwg.mxu0
        %v1559 = vld [vmem:[%s2] sm:$0xf]
        %v1560 = vpack.c.bf16 %v1559, %v1559
        %v1561 = vpack.c.bf16 %v1485, %v1481
        %v1562 = vpack.c.bf16 %v1487, %v1483
        %v1563 = vpack.c.bf16 %v1495, %v1491
        %v1564 = vpack.c.bf16 %v1497, %v1493
        %v1565 = vpack.c.bf16 %v1505, %v1501
        %v1566 = vpack.c.bf16 %v1507, %v1503
        %v1567 = vpack.c.bf16 %v1515, %v1511
        %v1568 = vpack.c.bf16 %v1517, %v1513
        %v1569 = vpack.c.bf16 %v1525, %v1521
        %v1570 = vpack.c.bf16 %v1527, %v1523
        %v1571 = vpack.c.bf16 %v1535, %v1531
        %v1572 = vpack.c.bf16 %v1537, %v1533
        %v1573 = vpack.c.bf16 %v1545, %v1541
        %v1574 = vpack.c.bf16 %v1547, %v1543
        %v1575 = vpack.c.bf16 %v1555, %v1551
        %v1576 = vpack.c.bf16 %v1557, %v1553
        %v1577 = vld [vmem:[%s3] sm:$0xf]
        %1579 = vset.pattern.permute.xlu0 0
        %1580 = vperm.xlu0 %1579, %v1577
        %v1581 = vpop.permute.xlu0 %1580
        %1583 = vmatprep.subr.bf16.mxu0 %v1576
        %1584 = vmatpush1.bf16.msra.mxu0 %v1575
        %1585 = vmatprep.subr.bf16.mxu0 %v1574
        %1586 = vmatpush1.bf16.msra.mxu0 %v1573
        %1587 = vmatprep.subr.bf16.mxu0 %v1572
        %1588 = vmatpush1.bf16.msra.mxu0 %v1571
        %1589 = vmatprep.subr.bf16.mxu0 %v1570
        %1590 = vmatpush1.bf16.msra.mxu0 %v1569
        %1591 = vmatprep.subr.bf16.mxu0 %v1568
        %1592 = vmatpush1.bf16.msra.mxu0 %v1567
        %1593 = vmatprep.subr.bf16.mxu0 %v1566
        %1594 = vmatpush1.bf16.msra.mxu0 %v1565
        %1595 = vmatprep.subr.bf16.mxu0 %v1564
        %1596 = vmatpush1.bf16.msra.mxu0 %v1563
        %1597 = vmatprep.subr.bf16.mxu0 %v1562
        %1598 = vmatpush1.bf16.msra.mxu0 %v1561
        %1599 = vmatprep.subr.bf16.mxu0 0
        %1600 = vmatpush2.bf16.msra.mxu0 0
        %1601 = vmatprep.subr.bf16.mxu0 0
        %1602 = vmatpush2.bf16.msra.mxu0 0
        %1603 = vmatprep.subr.bf16.mxu0 0
        %1604 = vmatpush2.bf16.msra.mxu0 0
        %1605 = vmatprep.subr.bf16.mxu0 0
        %1606 = vmatpush2.bf16.msra.mxu0 0
        %1607 = vmatprep.subr.bf16.mxu0 0
        %1608 = vmatpush2.bf16.msra.mxu0 0
        %1609 = vmatprep.subr.bf16.mxu0 0
        %1610 = vmatpush2.bf16.msra.mxu0 0
        %1611 = vmatprep.subr.bf16.mxu0 0
        %1612 = vmatpush2.bf16.msra.mxu0 0
        %1613 = vmatprep.subr.bf16.mxu0 0
        %1614 = vmatpush2.bf16.msra.mxu0 0
        %1615 = vmatprep.mubr.bf16.mxu0 0
        %1616 = vmatmul.mubr.bf16.gmra.mxu0 %v1560
        %v1617 = vpop.f32.mrf.mxu0
        %v1618 = vadd.f32 %v1581, %v1617
        %v1619 = vpop.f32.mrf.mxu0
        %v1620 = vadd.f32 %v1581, %v1619
        %v1621 = vpop.f32.mrf.mxu0
        %v1622 = vpop.f32.mrf.mxu0
        %1623 = vdwg.mxu0
        %vm1624 = vcmask 1043456
        %v1625 = vsel %vm1624, %v1618, 0.0
        %v1626 = vrot.slane %v1625, 4
        %v1627 = vadd.f32 %v1625, %v1626
        %v1628 = vrot.slane %v1627, 2
        %v1629 = vadd.f32 %v1627, %v1628
        %v1630 = vrot.slane %v1629, 1
        %v1631 = vadd.f32 %v1629, %v1630
        %v1632 = vsel %vm1624, %v1620, 0.0
        %v1633 = vrot.slane %v1632, 4
        %v1634 = vadd.f32 %v1632, %v1633
        %v1635 = vrot.slane %v1634, 2
        %v1636 = vadd.f32 %v1634, %v1635
        %v1637 = vrot.slane %v1636, 1
        %v1638 = vadd.f32 %v1636, %v1637
        %v1639 = vrcp.pop 4.0
        %v1640 = vmul.f32 %v1631, %v1639
        %v1641 = vmul.f32 %v1638, %v1639
        %v1642 = vsub.f32 %v1618, %v1640
        %v1643 = vsub.f32 %v1620, %v1641
        %v1644 = vmul.f32 %v1642, %v1642
        %v1645 = vmul.f32 %v1643, %v1643
        %v1646 = vsel %vm1624, %v1644, 0.0
        %v1647 = vrot.slane %v1646, 4
        %v1648 = vadd.f32 %v1646, %v1647
        %v1649 = vrot.slane %v1648, 2
        %v1650 = vadd.f32 %v1648, %v1649
        %v1651 = vrot.slane %v1650, 1
        %v1652 = vadd.f32 %v1650, %v1651
        %v1653 = vsel %vm1624, %v1645, 0.0
        %v1654 = vrot.slane %v1653, 4
        %v1655 = vadd.f32 %v1653, %v1654
        %v1656 = vrot.slane %v1655, 2
        %v1657 = vadd.f32 %v1655, %v1656
        %v1658 = vrot.slane %v1657, 1
        %v1659 = vadd.f32 %v1657, %v1658
        %v1660 = vmul.f32 %v1652, %v1639
        %v1661 = vmul.f32 %v1659, %v1639
        %v1662 = vadd.f32 %v1660, 1e-05
        %v1663 = vadd.f32 %v1661, 1e-05
        %v1664 = vrsqrt.pop %v1662
        %v1665 = vrsqrt.pop %v1663
        %v1666 = vmul.f32 %v1642, %v1664
        %v1667 = vmul.f32 %v1643, %v1665
        %v1668 = vld [vmem:[%s4] sm:$0xf]
        %1670 = vset.pattern.permute.xlu0 0
        %1671 = vperm.xlu0 %1670, %v1668
        %v1672 = vpop.permute.xlu0 %1671
        %v1674 = vmul.f32 %v1666, %v1672
        %v1675 = vmul.f32 %v1667, %v1672
        %v1678 = vcombine.low %v1674, %v1675
        %1680 = vst [vmem:[%s244] sm:$0xff] %v1678
        %s1681 = sand.u32 %s159, 1
        %s1682 = scalar_lea.sflag [#allocation3], %s1681
        %s1683 = sand.u32 %s159, 1
        %s1684 = smul.addr %s1683, 8
        %s1685 = scalar_lea.vmem [#allocation2], %s1684
        // Predicated region
        $region45: #{tpu_custom_call.1} parent=43 // pred_check
          %p1686 = pneg %p169
        $region46: #{tpu_custom_call.1} parent=43 // pred_check_branch
          %1688 = sbr.rel (%p1686) target = $region48
        $region47: #{tpu_custom_call.1} parent=43 // pred_region
          %s1690 = ssub.s32 128, 128
          %1691 = vsyncadd %s1682, %s1690
          %s1692 = smul.addr %s20, 2
          %s1693 = smul.addr %s1692, 64
          %s1694 = scalar_lea.hbm %s6, %s1693
          %s1696 = sshll.u32 %s1685, 4
          %s1697 = int_to_ptr.vmem [resolvable:$true] %s1696
          %1699 = dma.vmem_to_hbm [thread:$0]  %s1697, 128, %s1694, %s1682
        $region48: #{tpu_custom_call.1} parent=43 // pred_fallthru
          _
      $region44: #{tpu_custom_call.1} parent=5 // pred_fallthru
        _
      %p1700 = scmp.le.s32.totalorder 2, %s15
      // Predicated region
      $region49: #{tpu_custom_call.1} parent=5 // pred_check
        %p1701 = pneg %p1700
      $region50: #{tpu_custom_call.1} parent=5 // pred_check_branch
        %1703 = sbr.rel (%p1701) target = $region52
      $region51: #{tpu_custom_call.1} parent=5 // pred_region
        %s1704 = ssub.s32 %s15, 2
        // Predicated region
        $region53: #{tpu_custom_call.1} parent=51 // pred_check
          %p1705 = pneg %p175
        $region54: #{tpu_custom_call.1} parent=51 // pred_check_branch
          %1707 = sbr.rel (%p1705) target = $region56
        $region55: #{tpu_custom_call.1} parent=51 // pred_region
          %s1708 = sand.u32 %s160, 1
          %s1709 = scalar_lea.sflag [#allocation3], %s1708
          %s1710 = sand.u32 %s160, 1
          %s1711 = smul.addr %s1710, 8
          %s1712 = scalar_lea.vmem [#allocation2], %s1711
          %1713 = dma.done %s1709, 128
        $region56: #{tpu_custom_call.1} parent=51 // pred_fallthru
          _
      $region52: #{tpu_custom_call.1} parent=5 // pred_fallthru
        _
    $region6: #{tpu_custom_call.1} parent=1 // loop_footer
      %s19 = sadd.s32 1, %s15
    $region7: #{tpu_custom_call.1} parent=1 // loop_footer_branch
      %14 = sbr.rel target = $region3
    $region8: #{tpu_custom_call.1} parent=1 // loop_exit
      _
    %1714 = vsyncpa [#allocation3], 1
    %s1715 = scalar_lea.sflag [#allocation3], 1
    %1716 = vsyncpa %s1715, 1

</llo_original>
